<compile_context>
chip_gen: v6e
topology: v6e:2x2x1
jax: 0.10.0
libtpu: 0.0.40
codegen_flags: <defaults>
</compile_context>

<pallas_src>
import functools

import jax
import jax.numpy as jnp
from jax import lax
from jax.experimental import pallas as pl
from jax.experimental.pallas import tpu as pltpu


def _bn_pad_kernel(scale_ref, shift_ref, x_ref, out_ref, *, pad, cb):
    """One grid step == `cb` channels of the full batch.

    scale_ref/shift_ref: SMEM (C,) f32  (gamma*rsqrt(var+eps), BN(0))
    x_ref:   VMEM (N, cb, H, W)
    out_ref: VMEM (N, cb, H+2p, W+2p)
    """
    c0 = pl.program_id(0) * cb
    n, _, h, w = x_ref.shape
    wp = w + 2 * pad
    dt = out_ref.dtype

    # Static (unrolled) channel loop; per-iteration live values are tiny.
    for j in range(cb):
        s = scale_ref[c0 + j]
        t = shift_ref[c0 + j]
        y = (x_ref[:, j] * s + t).astype(dt)          # fused mul-add, (N, H, W)
        if pad > 0:
            # Border strips — each output element written exactly once.
            out_ref[:, j, 0:pad, :] = jnp.full((n, pad, wp), t, dtype=dt)
            out_ref[:, j, pad + h:, :] = jnp.full((n, pad, wp), t, dtype=dt)
            out_ref[:, j, pad:pad + h, 0:pad] = jnp.full((n, h, pad), t, dtype=dt)
            out_ref[:, j, pad:pad + h, pad + w:] = jnp.full((n, h, pad), t, dtype=dt)
            # Interior — written exactly once (no fill-then-overwrite).
            out_ref[:, j, pad:pad + h, pad:pad + w] = y
        else:
            out_ref[:, j] = y


def bn_and_pad(x_nchw, gamma, beta, running_mean, running_var,
               *, eps=1e-5, pad_pixels=2):
    """BNAndPadLayer.forward (eval-mode BN) on TPU via Pallas. Input/output NCHW."""
    N, C, H, W = x_nchw.shape
    p = int(pad_pixels)
    Hp, Wp = H + 2 * p, W + 2 * p

    # Precompute per-channel scale / shift (tiny length-C vectors).
    inv_std = 1.0 / jnp.sqrt(running_var.astype(jnp.float32) + float(eps))
    scale = gamma.astype(jnp.float32) * inv_std
    shift = beta.astype(jnp.float32) - running_mean.astype(jnp.float32) * scale

    # 2-wide parallel grid over channel halves (uses both TCs on v7x; harmless
    # on v5e/v6e). Each step handles the full batch for cb channels.
    num_chunks = 2 if (C >= 2 and C % 2 == 0) else 1
    cb = C // num_chunks

    kernel = functools.partial(_bn_pad_kernel, pad=p, cb=cb)
    smem_spec = pl.BlockSpec(memory_space=pltpu.MemorySpace.SMEM)

    return pl.pallas_call(
        kernel,
        out_shape=jax.ShapeDtypeStruct((N, C, Hp, Wp), x_nchw.dtype),
        grid=(num_chunks,),
        in_specs=[
            smem_spec,                                     # scale (C,)
            smem_spec,                                     # shift (C,)
            pl.BlockSpec((N, cb, H, W), lambda i: (0, i, 0, 0)),
        ],
        out_specs=pl.BlockSpec((N, cb, Hp, Wp), lambda i: (0, i, 0, 0)),
        compiler_params=pltpu.CompilerParams(dimension_semantics=("parallel",)),
    )(scale, shift, x_nchw)


def _reference(x, gamma, beta, rmean, rvar, eps, pad):
    """Pure-JAX reference mirroring the PyTorch forward (eval-mode BN)."""
    inv = 1.0 / jnp.sqrt(rvar + eps)
    y = (x - rmean[None, :, None, None]) * inv[None, :, None, None] \
        * gamma[None, :, None, None] + beta[None, :, None, None]
    pad_vals = (beta - rmean * gamma * inv)[None, :, None, None]
    out = jnp.pad(y, ((0, 0), (0, 0), (pad, pad), (pad, pad)))
    if pad > 0:
        out = out.at[:, :, :pad, :].set(pad_vals)
        out = out.at[:, :, -pad:, :].set(pad_vals)
        out = out.at[:, :, :, :pad].set(pad_vals)
        out = out.at[:, :, :, -pad:].set(pad_vals)
    return out


if __name__ == "__main__":
    # Shapes consistent with the module: num_features = 16 channels, pad_pixels = 2.
    N, C, H, W = 2, 16, 16, 16
    pad_pixels = 2
    eps = 1e-5

    key = jax.random.PRNGKey(0)
    kg, kb, km, kv, kx = jax.random.split(key, 5)
    gamma = 1.0 + 0.1 * jax.random.normal(kg, (C,), dtype=jnp.float32)
    beta = 0.1 * jax.random.normal(kb, (C,), dtype=jnp.float32)
    running_mean = 0.5 * jax.random.normal(km, (C,), dtype=jnp.float32)
    running_var = jax.random.uniform(kv, (C,), dtype=jnp.float32,
                                     minval=0.5, maxval=1.5)
    x = jax.random.normal(kx, (N, C, H, W), dtype=jnp.float32)

    out = bn_and_pad(x, gamma, beta, running_mean, running_var,
                     eps=eps, pad_pixels=pad_pixels)
    out = jax.block_until_ready(out)

    expected = _reference(x, gamma, beta, running_mean, running_var,
                          eps, pad_pixels)

    assert out.shape == (N, C, H + 2 * pad_pixels, W + 2 * pad_pixels), out.shape
    assert jnp.allclose(out, expected, atol=1e-5, rtol=1e-5), \
        float(jnp.max(jnp.abs(out - expected)))

    print("KERNEL_OK")
</pallas_src>

<mosaic_0001>
module attributes {stable_mosaic.version = 11 : i64} {
  func.func @_bn_pad_kernel(%arg0: i32, %arg1: memref<16xf32, #tpu.memory_space<smem>>, %arg2: memref<16xf32, #tpu.memory_space<smem>>, %arg3: memref<2x8x16x16xf32, #tpu.memory_space<vmem>>, %arg4: memref<2x8x20x20xf32, #tpu.memory_space<vmem>>) attributes {dimension_semantics = [#tpu.dimension_semantics<parallel>], iteration_bounds = array<i64: 2>, scalar_prefetch = 0 : i64, scratch_operands = 0 : i64, tpu.core_type = #tpu.core_type<tc>, window_params = [{transform_indices = @transform_0, window_bounds = array<i64: 16>}, {transform_indices = @transform_1, window_bounds = array<i64: 16>}, {transform_indices = @transform_2, window_bounds = array<i64: 2, 8, 16, 16>}, {transform_indices = @transform_3, window_bounds = array<i64: 2, 8, 20, 20>}]} {
    %c8_i32 = arith.constant 8 : i32
    %0 = arith.muli %arg0, %c8_i32 : i32
    %c0_i32 = arith.constant 0 : i32
    %1 = arith.addi %0, %c0_i32 : i32
    %2 = arith.index_cast %1 : i32 to index
    %3 = memref.load %arg1[%2] : memref<16xf32, #tpu.memory_space<smem>>
    %c0_i32_0 = arith.constant 0 : i32
    %4 = arith.addi %0, %c0_i32_0 : i32
    %5 = arith.index_cast %4 : i32 to index
    %6 = memref.load %arg2[%5] : memref<16xf32, #tpu.memory_space<smem>>
    %c0 = arith.constant 0 : index
    %c0_1 = arith.constant 0 : index
    %c0_2 = arith.constant 0 : index
    %c0_3 = arith.constant 0 : index
    %7 = vector.load %arg3[%c0, %c0_1, %c0_2, %c0_3] : memref<2x8x16x16xf32, #tpu.memory_space<vmem>>, vector<2x1x16x16xf32>
    %8 = vector.shape_cast %7 : vector<2x1x16x16xf32> to vector<2x16x16xf32>
    %9 = vector.broadcast %3 : f32 to vector<2x16x16xf32>
    %10 = arith.mulf %8, %9 : vector<2x16x16xf32>
    %11 = vector.broadcast %6 : f32 to vector<2x16x16xf32>
    %12 = arith.addf %10, %11 : vector<2x16x16xf32>
    %13 = vector.broadcast %6 : f32 to vector<2x2x20xf32>
    %c0_4 = arith.constant 0 : index
    %c0_5 = arith.constant 0 : index
    %c0_6 = arith.constant 0 : index
    %c0_7 = arith.constant 0 : index
    %14 = vector.load %arg4[%c0_4, %c0_5, %c0_6, %c0_7] : memref<2x8x20x20xf32, #tpu.memory_space<vmem>>, vector<2x1x2x20xf32>
    %15 = vector.shape_cast %14 : vector<2x1x2x20xf32> to vector<2x2x20xf32>
    %16 = vector.shape_cast %13 : vector<2x2x20xf32> to vector<2x1x2x20xf32>
    tpu.vector_store %arg4[%c0_4, %c0_5, %c0_6, %c0_7], %16 {strides = array<i32>} : memref<2x8x20x20xf32, #tpu.memory_space<vmem>>, vector<2x1x2x20xf32>,
    %17 = vector.broadcast %6 : f32 to vector<2x2x20xf32>
    %c0_8 = arith.constant 0 : index
    %c0_9 = arith.constant 0 : index
    %c18 = arith.constant 18 : index
    %c0_10 = arith.constant 0 : index
    %18 = vector.load %arg4[%c0_8, %c0_9, %c18, %c0_10] : memref<2x8x20x20xf32, #tpu.memory_space<vmem>>, vector<2x1x2x20xf32>
    %19 = vector.shape_cast %18 : vector<2x1x2x20xf32> to vector<2x2x20xf32>
    %20 = vector.shape_cast %17 : vector<2x2x20xf32> to vector<2x1x2x20xf32>
    tpu.vector_store %arg4[%c0_8, %c0_9, %c18, %c0_10], %20 {strides = array<i32>} : memref<2x8x20x20xf32, #tpu.memory_space<vmem>>, vector<2x1x2x20xf32>,
    %21 = vector.broadcast %6 : f32 to vector<2x16x2xf32>
    %c0_11 = arith.constant 0 : index
    %c0_12 = arith.constant 0 : index
    %c2 = arith.constant 2 : index
    %c0_13 = arith.constant 0 : index
    %22 = vector.load %arg4[%c0_11, %c0_12, %c2, %c0_13] : memref<2x8x20x20xf32, #tpu.memory_space<vmem>>, vector<2x1x16x2xf32>
    %23 = vector.shape_cast %22 : vector<2x1x16x2xf32> to vector<2x16x2xf32>
    %24 = vector.shape_cast %21 : vector<2x16x2xf32> to vector<2x1x16x2xf32>
    tpu.vector_store %arg4[%c0_11, %c0_12, %c2, %c0_13], %24 {strides = array<i32>} : memref<2x8x20x20xf32, #tpu.memory_space<vmem>>, vector<2x1x16x2xf32>,
    %25 = vector.broadcast %6 : f32 to vector<2x16x2xf32>
    %c0_14 = arith.constant 0 : index
    %c0_15 = arith.constant 0 : index
    %c2_16 = arith.constant 2 : index
    %c18_17 = arith.constant 18 : index
    %26 = vector.load %arg4[%c0_14, %c0_15, %c2_16, %c18_17] : memref<2x8x20x20xf32, #tpu.memory_space<vmem>>, vector<2x1x16x2xf32>
    %27 = vector.shape_cast %26 : vector<2x1x16x2xf32> to vector<2x16x2xf32>
    %28 = vector.shape_cast %25 : vector<2x16x2xf32> to vector<2x1x16x2xf32>
    tpu.vector_store %arg4[%c0_14, %c0_15, %c2_16, %c18_17], %28 {strides = array<i32>} : memref<2x8x20x20xf32, #tpu.memory_space<vmem>>, vector<2x1x16x2xf32>,
    %c0_18 = arith.constant 0 : index
    %c0_19 = arith.constant 0 : index
    %c2_20 = arith.constant 2 : index
    %c2_21 = arith.constant 2 : index
    %29 = vector.load %arg4[%c0_18, %c0_19, %c2_20, %c2_21] : memref<2x8x20x20xf32, #tpu.memory_space<vmem>>, vector<2x1x16x16xf32>
    %30 = vector.shape_cast %29 : vector<2x1x16x16xf32> to vector<2x16x16xf32>
    %31 = vector.shape_cast %12 : vector<2x16x16xf32> to vector<2x1x16x16xf32>
    tpu.vector_store %arg4[%c0_18, %c0_19, %c2_20, %c2_21], %31 {strides = array<i32>} : memref<2x8x20x20xf32, #tpu.memory_space<vmem>>, vector<2x1x16x16xf32>,
    %c1_i32 = arith.constant 1 : i32
    %32 = arith.addi %0, %c1_i32 : i32
    %33 = arith.index_cast %32 : i32 to index
    %34 = memref.load %arg1[%33] : memref<16xf32, #tpu.memory_space<smem>>
    %c1_i32_22 = arith.constant 1 : i32
    %35 = arith.addi %0, %c1_i32_22 : i32
    %36 = arith.index_cast %35 : i32 to index
    %37 = memref.load %arg2[%36] : memref<16xf32, #tpu.memory_space<smem>>
    %c0_23 = arith.constant 0 : index
    %c1 = arith.constant 1 : index
    %c0_24 = arith.constant 0 : index
    %c0_25 = arith.constant 0 : index
    %38 = vector.load %arg3[%c0_23, %c1, %c0_24, %c0_25] : memref<2x8x16x16xf32, #tpu.memory_space<vmem>>, vector<2x1x16x16xf32>
    %39 = vector.shape_cast %38 : vector<2x1x16x16xf32> to vector<2x16x16xf32>
    %40 = vector.broadcast %34 : f32 to vector<2x16x16xf32>
    %41 = arith.mulf %39, %40 : vector<2x16x16xf32>
    %42 = vector.broadcast %37 : f32 to vector<2x16x16xf32>
    %43 = arith.addf %41, %42 : vector<2x16x16xf32>
    %44 = vector.broadcast %37 : f32 to vector<2x2x20xf32>
    %c0_26 = arith.constant 0 : index
    %c1_27 = arith.constant 1 : index
    %c0_28 = arith.constant 0 : index
    %c0_29 = arith.constant 0 : index
    %45 = vector.load %arg4[%c0_26, %c1_27, %c0_28, %c0_29] : memref<2x8x20x20xf32, #tpu.memory_space<vmem>>, vector<2x1x2x20xf32>
    %46 = vector.shape_cast %45 : vector<2x1x2x20xf32> to vector<2x2x20xf32>
    %47 = vector.shape_cast %44 : vector<2x2x20xf32> to vector<2x1x2x20xf32>
    tpu.vector_store %arg4[%c0_26, %c1_27, %c0_28, %c0_29], %47 {strides = array<i32>} : memref<2x8x20x20xf32, #tpu.memory_space<vmem>>, vector<2x1x2x20xf32>,
    %48 = vector.broadcast %37 : f32 to vector<2x2x20xf32>
    %c0_30 = arith.constant 0 : index
    %c1_31 = arith.constant 1 : index
    %c18_32 = arith.constant 18 : index
    %c0_33 = arith.constant 0 : index
    %49 = vector.load %arg4[%c0_30, %c1_31, %c18_32, %c0_33] : memref<2x8x20x20xf32, #tpu.memory_space<vmem>>, vector<2x1x2x20xf32>
    %50 = vector.shape_cast %49 : vector<2x1x2x20xf32> to vector<2x2x20xf32>
    %51 = vector.shape_cast %48 : vector<2x2x20xf32> to vector<2x1x2x20xf32>
    tpu.vector_store %arg4[%c0_30, %c1_31, %c18_32, %c0_33], %51 {strides = array<i32>} : memref<2x8x20x20xf32, #tpu.memory_space<vmem>>, vector<2x1x2x20xf32>,
    %52 = vector.broadcast %37 : f32 to vector<2x16x2xf32>
    %c0_34 = arith.constant 0 : index
    %c1_35 = arith.constant 1 : index
    %c2_36 = arith.constant 2 : index
    %c0_37 = arith.constant 0 : index
    %53 = vector.load %arg4[%c0_34, %c1_35, %c2_36, %c0_37] : memref<2x8x20x20xf32, #tpu.memory_space<vmem>>, vector<2x1x16x2xf32>
    %54 = vector.shape_cast %53 : vector<2x1x16x2xf32> to vector<2x16x2xf32>
    %55 = vector.shape_cast %52 : vector<2x16x2xf32> to vector<2x1x16x2xf32>
    tpu.vector_store %arg4[%c0_34, %c1_35, %c2_36, %c0_37], %55 {strides = array<i32>} : memref<2x8x20x20xf32, #tpu.memory_space<vmem>>, vector<2x1x16x2xf32>,
    %56 = vector.broadcast %37 : f32 to vector<2x16x2xf32>
    %c0_38 = arith.constant 0 : index
    %c1_39 = arith.constant 1 : index
    %c2_40 = arith.constant 2 : index
    %c18_41 = arith.constant 18 : index
    %57 = vector.load %arg4[%c0_38, %c1_39, %c2_40, %c18_41] : memref<2x8x20x20xf32, #tpu.memory_space<vmem>>, vector<2x1x16x2xf32>
    %58 = vector.shape_cast %57 : vector<2x1x16x2xf32> to vector<2x16x2xf32>
    %59 = vector.shape_cast %56 : vector<2x16x2xf32> to vector<2x1x16x2xf32>
    tpu.vector_store %arg4[%c0_38, %c1_39, %c2_40, %c18_41], %59 {strides = array<i32>} : memref<2x8x20x20xf32, #tpu.memory_space<vmem>>, vector<2x1x16x2xf32>,
    %c0_42 = arith.constant 0 : index
    %c1_43 = arith.constant 1 : index
    %c2_44 = arith.constant 2 : index
    %c2_45 = arith.constant 2 : index
    %60 = vector.load %arg4[%c0_42, %c1_43, %c2_44, %c2_45] : memref<2x8x20x20xf32, #tpu.memory_space<vmem>>, vector<2x1x16x16xf32>
    %61 = vector.shape_cast %60 : vector<2x1x16x16xf32> to vector<2x16x16xf32>
    %62 = vector.shape_cast %43 : vector<2x16x16xf32> to vector<2x1x16x16xf32>
    tpu.vector_store %arg4[%c0_42, %c1_43, %c2_44, %c2_45], %62 {strides = array<i32>} : memref<2x8x20x20xf32, #tpu.memory_space<vmem>>, vector<2x1x16x16xf32>,
    %c2_i32 = arith.constant 2 : i32
    %63 = arith.addi %0, %c2_i32 : i32
    %64 = arith.index_cast %63 : i32 to index
    %65 = memref.load %arg1[%64] : memref<16xf32, #tpu.memory_space<smem>>
    %c2_i32_46 = arith.constant 2 : i32
    %66 = arith.addi %0, %c2_i32_46 : i32
    %67 = arith.index_cast %66 : i32 to index
    %68 = memref.load %arg2[%67] : memref<16xf32, #tpu.memory_space<smem>>
    %c0_47 = arith.constant 0 : index
    %c2_48 = arith.constant 2 : index
    %c0_49 = arith.constant 0 : index
    %c0_50 = arith.constant 0 : index
    %69 = vector.load %arg3[%c0_47, %c2_48, %c0_49, %c0_50] : memref<2x8x16x16xf32, #tpu.memory_space<vmem>>, vector<2x1x16x16xf32>
    %70 = vector.shape_cast %69 : vector<2x1x16x16xf32> to vector<2x16x16xf32>
    %71 = vector.broadcast %65 : f32 to vector<2x16x16xf32>
    %72 = arith.mulf %70, %71 : vector<2x16x16xf32>
    %73 = vector.broadcast %68 : f32 to vector<2x16x16xf32>
    %74 = arith.addf %72, %73 : vector<2x16x16xf32>
    %75 = vector.broadcast %68 : f32 to vector<2x2x20xf32>
    %c0_51 = arith.constant 0 : index
    %c2_52 = arith.constant 2 : index
    %c0_53 = arith.constant 0 : index
    %c0_54 = arith.constant 0 : index
    %76 = vector.load %arg4[%c0_51, %c2_52, %c0_53, %c0_54] : memref<2x8x20x20xf32, #tpu.memory_space<vmem>>, vector<2x1x2x20xf32>
    %77 = vector.shape_cast %76 : vector<2x1x2x20xf32> to vector<2x2x20xf32>
    %78 = vector.shape_cast %75 : vector<2x2x20xf32> to vector<2x1x2x20xf32>
    tpu.vector_store %arg4[%c0_51, %c2_52, %c0_53, %c0_54], %78 {strides = array<i32>} : memref<2x8x20x20xf32, #tpu.memory_space<vmem>>, vector<2x1x2x20xf32>,
    %79 = vector.broadcast %68 : f32 to vector<2x2x20xf32>
    %c0_55 = arith.constant 0 : index
    %c2_56 = arith.constant 2 : index
    %c18_57 = arith.constant 18 : index
    %c0_58 = arith.constant 0 : index
    %80 = vector.load %arg4[%c0_55, %c2_56, %c18_57, %c0_58] : memref<2x8x20x20xf32, #tpu.memory_space<vmem>>, vector<2x1x2x20xf32>
    %81 = vector.shape_cast %80 : vector<2x1x2x20xf32> to vector<2x2x20xf32>
    %82 = vector.shape_cast %79 : vector<2x2x20xf32> to vector<2x1x2x20xf32>
    tpu.vector_store %arg4[%c0_55, %c2_56, %c18_57, %c0_58], %82 {strides = array<i32>} : memref<2x8x20x20xf32, #tpu.memory_space<vmem>>, vector<2x1x2x20xf32>,
    %83 = vector.broadcast %68 : f32 to vector<2x16x2xf32>
    %c0_59 = arith.constant 0 : index
    %c2_60 = arith.constant 2 : index
    %c2_61 = arith.constant 2 : index
    %c0_62 = arith.constant 0 : index
    %84 = vector.load %arg4[%c0_59, %c2_60, %c2_61, %c0_62] : memref<2x8x20x20xf32, #tpu.memory_space<vmem>>, vector<2x1x16x2xf32>
    %85 = vector.shape_cast %84 : vector<2x1x16x2xf32> to vector<2x16x2xf32>
    %86 = vector.shape_cast %83 : vector<2x16x2xf32> to vector<2x1x16x2xf32>
    tpu.vector_store %arg4[%c0_59, %c2_60, %c2_61, %c0_62], %86 {strides = array<i32>} : memref<2x8x20x20xf32, #tpu.memory_space<vmem>>, vector<2x1x16x2xf32>,
    %87 = vector.broadcast %68 : f32 to vector<2x16x2xf32>
    %c0_63 = arith.constant 0 : index
    %c2_64 = arith.constant 2 : index
    %c2_65 = arith.constant 2 : index
    %c18_66 = arith.constant 18 : index
    %88 = vector.load %arg4[%c0_63, %c2_64, %c2_65, %c18_66] : memref<2x8x20x20xf32, #tpu.memory_space<vmem>>, vector<2x1x16x2xf32>
    %89 = vector.shape_cast %88 : vector<2x1x16x2xf32> to vector<2x16x2xf32>
    %90 = vector.shape_cast %87 : vector<2x16x2xf32> to vector<2x1x16x2xf32>
    tpu.vector_store %arg4[%c0_63, %c2_64, %c2_65, %c18_66], %90 {strides = array<i32>} : memref<2x8x20x20xf32, #tpu.memory_space<vmem>>, vector<2x1x16x2xf32>,
    %c0_67 = arith.constant 0 : index
    %c2_68 = arith.constant 2 : index
    %c2_69 = arith.constant 2 : index
    %c2_70 = arith.constant 2 : index
    %91 = vector.load %arg4[%c0_67, %c2_68, %c2_69, %c2_70] : memref<2x8x20x20xf32, #tpu.memory_space<vmem>>, vector<2x1x16x16xf32>
    %92 = vector.shape_cast %91 : vector<2x1x16x16xf32> to vector<2x16x16xf32>
    %93 = vector.shape_cast %74 : vector<2x16x16xf32> to vector<2x1x16x16xf32>
    tpu.vector_store %arg4[%c0_67, %c2_68, %c2_69, %c2_70], %93 {strides = array<i32>} : memref<2x8x20x20xf32, #tpu.memory_space<vmem>>, vector<2x1x16x16xf32>,
    %c3_i32 = arith.constant 3 : i32
    %94 = arith.addi %0, %c3_i32 : i32
    %95 = arith.index_cast %94 : i32 to index
    %96 = memref.load %arg1[%95] : memref<16xf32, #tpu.memory_space<smem>>
    %c3_i32_71 = arith.constant 3 : i32
    %97 = arith.addi %0, %c3_i32_71 : i32
    %98 = arith.index_cast %97 : i32 to index
    %99 = memref.load %arg2[%98] : memref<16xf32, #tpu.memory_space<smem>>
    %c0_72 = arith.constant 0 : index
    %c3 = arith.constant 3 : index
    %c0_73 = arith.constant 0 : index
    %c0_74 = arith.constant 0 : index
    %100 = vector.load %arg3[%c0_72, %c3, %c0_73, %c0_74] : memref<2x8x16x16xf32, #tpu.memory_space<vmem>>, vector<2x1x16x16xf32>
    %101 = vector.shape_cast %100 : vector<2x1x16x16xf32> to vector<2x16x16xf32>
    %102 = vector.broadcast %96 : f32 to vector<2x16x16xf32>
    %103 = arith.mulf %101, %102 : vector<2x16x16xf32>
    %104 = vector.broadcast %99 : f32 to vector<2x16x16xf32>
    %105 = arith.addf %103, %104 : vector<2x16x16xf32>
    %106 = vector.broadcast %99 : f32 to vector<2x2x20xf32>
    %c0_75 = arith.constant 0 : index
    %c3_76 = arith.constant 3 : index
    %c0_77 = arith.constant 0 : index
    %c0_78 = arith.constant 0 : index
    %107 = vector.load %arg4[%c0_75, %c3_76, %c0_77, %c0_78] : memref<2x8x20x20xf32, #tpu.memory_space<vmem>>, vector<2x1x2x20xf32>
    %108 = vector.shape_cast %107 : vector<2x1x2x20xf32> to vector<2x2x20xf32>
    %109 = vector.shape_cast %106 : vector<2x2x20xf32> to vector<2x1x2x20xf32>
    tpu.vector_store %arg4[%c0_75, %c3_76, %c0_77, %c0_78], %109 {strides = array<i32>} : memref<2x8x20x20xf32, #tpu.memory_space<vmem>>, vector<2x1x2x20xf32>,
    %110 = vector.broadcast %99 : f32 to vector<2x2x20xf32>
    %c0_79 = arith.constant 0 : index
    %c3_80 = arith.constant 3 : index
    %c18_81 = arith.constant 18 : index
    %c0_82 = arith.constant 0 : index
    %111 = vector.load %arg4[%c0_79, %c3_80, %c18_81, %c0_82] : memref<2x8x20x20xf32, #tpu.memory_space<vmem>>, vector<2x1x2x20xf32>
    %112 = vector.shape_cast %111 : vector<2x1x2x20xf32> to vector<2x2x20xf32>
    %113 = vector.shape_cast %110 : vector<2x2x20xf32> to vector<2x1x2x20xf32>
    tpu.vector_store %arg4[%c0_79, %c3_80, %c18_81, %c0_82], %113 {strides = array<i32>} : memref<2x8x20x20xf32, #tpu.memory_space<vmem>>, vector<2x1x2x20xf32>,
    %114 = vector.broadcast %99 : f32 to vector<2x16x2xf32>
    %c0_83 = arith.constant 0 : index
    %c3_84 = arith.constant 3 : index
    %c2_85 = arith.constant 2 : index
    %c0_86 = arith.constant 0 : index
    %115 = vector.load %arg4[%c0_83, %c3_84, %c2_85, %c0_86] : memref<2x8x20x20xf32, #tpu.memory_space<vmem>>, vector<2x1x16x2xf32>
    %116 = vector.shape_cast %115 : vector<2x1x16x2xf32> to vector<2x16x2xf32>
    %117 = vector.shape_cast %114 : vector<2x16x2xf32> to vector<2x1x16x2xf32>
    tpu.vector_store %arg4[%c0_83, %c3_84, %c2_85, %c0_86], %117 {strides = array<i32>} : memref<2x8x20x20xf32, #tpu.memory_space<vmem>>, vector<2x1x16x2xf32>,
    %118 = vector.broadcast %99 : f32 to vector<2x16x2xf32>
    %c0_87 = arith.constant 0 : index
    %c3_88 = arith.constant 3 : index
    %c2_89 = arith.constant 2 : index
    %c18_90 = arith.constant 18 : index
    %119 = vector.load %arg4[%c0_87, %c3_88, %c2_89, %c18_90] : memref<2x8x20x20xf32, #tpu.memory_space<vmem>>, vector<2x1x16x2xf32>
    %120 = vector.shape_cast %119 : vector<2x1x16x2xf32> to vector<2x16x2xf32>
    %121 = vector.shape_cast %118 : vector<2x16x2xf32> to vector<2x1x16x2xf32>
    tpu.vector_store %arg4[%c0_87, %c3_88, %c2_89, %c18_90], %121 {strides = array<i32>} : memref<2x8x20x20xf32, #tpu.memory_space<vmem>>, vector<2x1x16x2xf32>,
    %c0_91 = arith.constant 0 : index
    %c3_92 = arith.constant 3 : index
    %c2_93 = arith.constant 2 : index
    %c2_94 = arith.constant 2 : index
    %122 = vector.load %arg4[%c0_91, %c3_92, %c2_93, %c2_94] : memref<2x8x20x20xf32, #tpu.memory_space<vmem>>, vector<2x1x16x16xf32>
    %123 = vector.shape_cast %122 : vector<2x1x16x16xf32> to vector<2x16x16xf32>
    %124 = vector.shape_cast %105 : vector<2x16x16xf32> to vector<2x1x16x16xf32>
    tpu.vector_store %arg4[%c0_91, %c3_92, %c2_93, %c2_94], %124 {strides = array<i32>} : memref<2x8x20x20xf32, #tpu.memory_space<vmem>>, vector<2x1x16x16xf32>,
    %c4_i32 = arith.constant 4 : i32
    %125 = arith.addi %0, %c4_i32 : i32
    %126 = arith.index_cast %125 : i32 to index
    %127 = memref.load %arg1[%126] : memref<16xf32, #tpu.memory_space<smem>>
    %c4_i32_95 = arith.constant 4 : i32
    %128 = arith.addi %0, %c4_i32_95 : i32
    %129 = arith.index_cast %128 : i32 to index
    %130 = memref.load %arg2[%129] : memref<16xf32, #tpu.memory_space<smem>>
    %c0_96 = arith.constant 0 : index
    %c4 = arith.constant 4 : index
    %c0_97 = arith.constant 0 : index
    %c0_98 = arith.constant 0 : index
    %131 = vector.load %arg3[%c0_96, %c4, %c0_97, %c0_98] : memref<2x8x16x16xf32, #tpu.memory_space<vmem>>, vector<2x1x16x16xf32>
    %132 = vector.shape_cast %131 : vector<2x1x16x16xf32> to vector<2x16x16xf32>
    %133 = vector.broadcast %127 : f32 to vector<2x16x16xf32>
    %134 = arith.mulf %132, %133 : vector<2x16x16xf32>
    %135 = vector.broadcast %130 : f32 to vector<2x16x16xf32>
    %136 = arith.addf %134, %135 : vector<2x16x16xf32>
    %137 = vector.broadcast %130 : f32 to vector<2x2x20xf32>
    %c0_99 = arith.constant 0 : index
    %c4_100 = arith.constant 4 : index
    %c0_101 = arith.constant 0 : index
    %c0_102 = arith.constant 0 : index
    %138 = vector.load %arg4[%c0_99, %c4_100, %c0_101, %c0_102] : memref<2x8x20x20xf32, #tpu.memory_space<vmem>>, vector<2x1x2x20xf32>
    %139 = vector.shape_cast %138 : vector<2x1x2x20xf32> to vector<2x2x20xf32>
    %140 = vector.shape_cast %137 : vector<2x2x20xf32> to vector<2x1x2x20xf32>
    tpu.vector_store %arg4[%c0_99, %c4_100, %c0_101, %c0_102], %140 {strides = array<i32>} : memref<2x8x20x20xf32, #tpu.memory_space<vmem>>, vector<2x1x2x20xf32>,
    %141 = vector.broadcast %130 : f32 to vector<2x2x20xf32>
    %c0_103 = arith.constant 0 : index
    %c4_104 = arith.constant 4 : index
    %c18_105 = arith.constant 18 : index
    %c0_106 = arith.constant 0 : index
    %142 = vector.load %arg4[%c0_103, %c4_104, %c18_105, %c0_106] : memref<2x8x20x20xf32, #tpu.memory_space<vmem>>, vector<2x1x2x20xf32>
    %143 = vector.shape_cast %142 : vector<2x1x2x20xf32> to vector<2x2x20xf32>
    %144 = vector.shape_cast %141 : vector<2x2x20xf32> to vector<2x1x2x20xf32>
    tpu.vector_store %arg4[%c0_103, %c4_104, %c18_105, %c0_106], %144 {strides = array<i32>} : memref<2x8x20x20xf32, #tpu.memory_space<vmem>>, vector<2x1x2x20xf32>,
    %145 = vector.broadcast %130 : f32 to vector<2x16x2xf32>
    %c0_107 = arith.constant 0 : index
    %c4_108 = arith.constant 4 : index
    %c2_109 = arith.constant 2 : index
    %c0_110 = arith.constant 0 : index
    %146 = vector.load %arg4[%c0_107, %c4_108, %c2_109, %c0_110] : memref<2x8x20x20xf32, #tpu.memory_space<vmem>>, vector<2x1x16x2xf32>
    %147 = vector.shape_cast %146 : vector<2x1x16x2xf32> to vector<2x16x2xf32>
    %148 = vector.shape_cast %145 : vector<2x16x2xf32> to vector<2x1x16x2xf32>
    tpu.vector_store %arg4[%c0_107, %c4_108, %c2_109, %c0_110], %148 {strides = array<i32>} : memref<2x8x20x20xf32, #tpu.memory_space<vmem>>, vector<2x1x16x2xf32>,
    %149 = vector.broadcast %130 : f32 to vector<2x16x2xf32>
    %c0_111 = arith.constant 0 : index
    %c4_112 = arith.constant 4 : index
    %c2_113 = arith.constant 2 : index
    %c18_114 = arith.constant 18 : index
    %150 = vector.load %arg4[%c0_111, %c4_112, %c2_113, %c18_114] : memref<2x8x20x20xf32, #tpu.memory_space<vmem>>, vector<2x1x16x2xf32>
    %151 = vector.shape_cast %150 : vector<2x1x16x2xf32> to vector<2x16x2xf32>
    %152 = vector.shape_cast %149 : vector<2x16x2xf32> to vector<2x1x16x2xf32>
    tpu.vector_store %arg4[%c0_111, %c4_112, %c2_113, %c18_114], %152 {strides = array<i32>} : memref<2x8x20x20xf32, #tpu.memory_space<vmem>>, vector<2x1x16x2xf32>,
    %c0_115 = arith.constant 0 : index
    %c4_116 = arith.constant 4 : index
    %c2_117 = arith.constant 2 : index
    %c2_118 = arith.constant 2 : index
    %153 = vector.load %arg4[%c0_115, %c4_116, %c2_117, %c2_118] : memref<2x8x20x20xf32, #tpu.memory_space<vmem>>, vector<2x1x16x16xf32>
    %154 = vector.shape_cast %153 : vector<2x1x16x16xf32> to vector<2x16x16xf32>
    %155 = vector.shape_cast %136 : vector<2x16x16xf32> to vector<2x1x16x16xf32>
    tpu.vector_store %arg4[%c0_115, %c4_116, %c2_117, %c2_118], %155 {strides = array<i32>} : memref<2x8x20x20xf32, #tpu.memory_space<vmem>>, vector<2x1x16x16xf32>,
    %c5_i32 = arith.constant 5 : i32
    %156 = arith.addi %0, %c5_i32 : i32
    %157 = arith.index_cast %156 : i32 to index
    %158 = memref.load %arg1[%157] : memref<16xf32, #tpu.memory_space<smem>>
    %c5_i32_119 = arith.constant 5 : i32
    %159 = arith.addi %0, %c5_i32_119 : i32
    %160 = arith.index_cast %159 : i32 to index
    %161 = memref.load %arg2[%160] : memref<16xf32, #tpu.memory_space<smem>>
    %c0_120 = arith.constant 0 : index
    %c5 = arith.constant 5 : index
    %c0_121 = arith.constant 0 : index
    %c0_122 = arith.constant 0 : index
    %162 = vector.load %arg3[%c0_120, %c5, %c0_121, %c0_122] : memref<2x8x16x16xf32, #tpu.memory_space<vmem>>, vector<2x1x16x16xf32>
    %163 = vector.shape_cast %162 : vector<2x1x16x16xf32> to vector<2x16x16xf32>
    %164 = vector.broadcast %158 : f32 to vector<2x16x16xf32>
    %165 = arith.mulf %163, %164 : vector<2x16x16xf32>
    %166 = vector.broadcast %161 : f32 to vector<2x16x16xf32>
    %167 = arith.addf %165, %166 : vector<2x16x16xf32>
    %168 = vector.broadcast %161 : f32 to vector<2x2x20xf32>
    %c0_123 = arith.constant 0 : index
    %c5_124 = arith.constant 5 : index
    %c0_125 = arith.constant 0 : index
    %c0_126 = arith.constant 0 : index
    %169 = vector.load %arg4[%c0_123, %c5_124, %c0_125, %c0_126] : memref<2x8x20x20xf32, #tpu.memory_space<vmem>>, vector<2x1x2x20xf32>
    %170 = vector.shape_cast %169 : vector<2x1x2x20xf32> to vector<2x2x20xf32>
    %171 = vector.shape_cast %168 : vector<2x2x20xf32> to vector<2x1x2x20xf32>
    tpu.vector_store %arg4[%c0_123, %c5_124, %c0_125, %c0_126], %171 {strides = array<i32>} : memref<2x8x20x20xf32, #tpu.memory_space<vmem>>, vector<2x1x2x20xf32>,
    %172 = vector.broadcast %161 : f32 to vector<2x2x20xf32>
    %c0_127 = arith.constant 0 : index
    %c5_128 = arith.constant 5 : index
    %c18_129 = arith.constant 18 : index
    %c0_130 = arith.constant 0 : index
    %173 = vector.load %arg4[%c0_127, %c5_128, %c18_129, %c0_130] : memref<2x8x20x20xf32, #tpu.memory_space<vmem>>, vector<2x1x2x20xf32>
    %174 = vector.shape_cast %173 : vector<2x1x2x20xf32> to vector<2x2x20xf32>
    %175 = vector.shape_cast %172 : vector<2x2x20xf32> to vector<2x1x2x20xf32>
    tpu.vector_store %arg4[%c0_127, %c5_128, %c18_129, %c0_130], %175 {strides = array<i32>} : memref<2x8x20x20xf32, #tpu.memory_space<vmem>>, vector<2x1x2x20xf32>,
    %176 = vector.broadcast %161 : f32 to vector<2x16x2xf32>
    %c0_131 = arith.constant 0 : index
    %c5_132 = arith.constant 5 : index
    %c2_133 = arith.constant 2 : index
    %c0_134 = arith.constant 0 : index
    %177 = vector.load %arg4[%c0_131, %c5_132, %c2_133, %c0_134] : memref<2x8x20x20xf32, #tpu.memory_space<vmem>>, vector<2x1x16x2xf32>
    %178 = vector.shape_cast %177 : vector<2x1x16x2xf32> to vector<2x16x2xf32>
    %179 = vector.shape_cast %176 : vector<2x16x2xf32> to vector<2x1x16x2xf32>
    tpu.vector_store %arg4[%c0_131, %c5_132, %c2_133, %c0_134], %179 {strides = array<i32>} : memref<2x8x20x20xf32, #tpu.memory_space<vmem>>, vector<2x1x16x2xf32>,
    %180 = vector.broadcast %161 : f32 to vector<2x16x2xf32>
    %c0_135 = arith.constant 0 : index
    %c5_136 = arith.constant 5 : index
    %c2_137 = arith.constant 2 : index
    %c18_138 = arith.constant 18 : index
    %181 = vector.load %arg4[%c0_135, %c5_136, %c2_137, %c18_138] : memref<2x8x20x20xf32, #tpu.memory_space<vmem>>, vector<2x1x16x2xf32>
    %182 = vector.shape_cast %181 : vector<2x1x16x2xf32> to vector<2x16x2xf32>
    %183 = vector.shape_cast %180 : vector<2x16x2xf32> to vector<2x1x16x2xf32>
    tpu.vector_store %arg4[%c0_135, %c5_136, %c2_137, %c18_138], %183 {strides = array<i32>} : memref<2x8x20x20xf32, #tpu.memory_space<vmem>>, vector<2x1x16x2xf32>,
    %c0_139 = arith.constant 0 : index
    %c5_140 = arith.constant 5 : index
    %c2_141 = arith.constant 2 : index
    %c2_142 = arith.constant 2 : index
    %184 = vector.load %arg4[%c0_139, %c5_140, %c2_141, %c2_142] : memref<2x8x20x20xf32, #tpu.memory_space<vmem>>, vector<2x1x16x16xf32>
    %185 = vector.shape_cast %184 : vector<2x1x16x16xf32> to vector<2x16x16xf32>
    %186 = vector.shape_cast %167 : vector<2x16x16xf32> to vector<2x1x16x16xf32>
    tpu.vector_store %arg4[%c0_139, %c5_140, %c2_141, %c2_142], %186 {strides = array<i32>} : memref<2x8x20x20xf32, #tpu.memory_space<vmem>>, vector<2x1x16x16xf32>,
    %c6_i32 = arith.constant 6 : i32
    %187 = arith.addi %0, %c6_i32 : i32
    %188 = arith.index_cast %187 : i32 to index
    %189 = memref.load %arg1[%188] : memref<16xf32, #tpu.memory_space<smem>>
    %c6_i32_143 = arith.constant 6 : i32
    %190 = arith.addi %0, %c6_i32_143 : i32
    %191 = arith.index_cast %190 : i32 to index
    %192 = memref.load %arg2[%191] : memref<16xf32, #tpu.memory_space<smem>>
    %c0_144 = arith.constant 0 : index
    %c6 = arith.constant 6 : index
    %c0_145 = arith.constant 0 : index
    %c0_146 = arith.constant 0 : index
    %193 = vector.load %arg3[%c0_144, %c6, %c0_145, %c0_146] : memref<2x8x16x16xf32, #tpu.memory_space<vmem>>, vector<2x1x16x16xf32>
    %194 = vector.shape_cast %193 : vector<2x1x16x16xf32> to vector<2x16x16xf32>
    %195 = vector.broadcast %189 : f32 to vector<2x16x16xf32>
    %196 = arith.mulf %194, %195 : vector<2x16x16xf32>
    %197 = vector.broadcast %192 : f32 to vector<2x16x16xf32>
    %198 = arith.addf %196, %197 : vector<2x16x16xf32>
    %199 = vector.broadcast %192 : f32 to vector<2x2x20xf32>
    %c0_147 = arith.constant 0 : index
    %c6_148 = arith.constant 6 : index
    %c0_149 = arith.constant 0 : index
    %c0_150 = arith.constant 0 : index
    %200 = vector.load %arg4[%c0_147, %c6_148, %c0_149, %c0_150] : memref<2x8x20x20xf32, #tpu.memory_space<vmem>>, vector<2x1x2x20xf32>
    %201 = vector.shape_cast %200 : vector<2x1x2x20xf32> to vector<2x2x20xf32>
    %202 = vector.shape_cast %199 : vector<2x2x20xf32> to vector<2x1x2x20xf32>
    tpu.vector_store %arg4[%c0_147, %c6_148, %c0_149, %c0_150], %202 {strides = array<i32>} : memref<2x8x20x20xf32, #tpu.memory_space<vmem>>, vector<2x1x2x20xf32>,
    %203 = vector.broadcast %192 : f32 to vector<2x2x20xf32>
    %c0_151 = arith.constant 0 : index
    %c6_152 = arith.constant 6 : index
    %c18_153 = arith.constant 18 : index
    %c0_154 = arith.constant 0 : index
    %204 = vector.load %arg4[%c0_151, %c6_152, %c18_153, %c0_154] : memref<2x8x20x20xf32, #tpu.memory_space<vmem>>, vector<2x1x2x20xf32>
    %205 = vector.shape_cast %204 : vector<2x1x2x20xf32> to vector<2x2x20xf32>
    %206 = vector.shape_cast %203 : vector<2x2x20xf32> to vector<2x1x2x20xf32>
    tpu.vector_store %arg4[%c0_151, %c6_152, %c18_153, %c0_154], %206 {strides = array<i32>} : memref<2x8x20x20xf32, #tpu.memory_space<vmem>>, vector<2x1x2x20xf32>,
    %207 = vector.broadcast %192 : f32 to vector<2x16x2xf32>
    %c0_155 = arith.constant 0 : index
    %c6_156 = arith.constant 6 : index
    %c2_157 = arith.constant 2 : index
    %c0_158 = arith.constant 0 : index
    %208 = vector.load %arg4[%c0_155, %c6_156, %c2_157, %c0_158] : memref<2x8x20x20xf32, #tpu.memory_space<vmem>>, vector<2x1x16x2xf32>
    %209 = vector.shape_cast %208 : vector<2x1x16x2xf32> to vector<2x16x2xf32>
    %210 = vector.shape_cast %207 : vector<2x16x2xf32> to vector<2x1x16x2xf32>
    tpu.vector_store %arg4[%c0_155, %c6_156, %c2_157, %c0_158], %210 {strides = array<i32>} : memref<2x8x20x20xf32, #tpu.memory_space<vmem>>, vector<2x1x16x2xf32>,
    %211 = vector.broadcast %192 : f32 to vector<2x16x2xf32>
    %c0_159 = arith.constant 0 : index
    %c6_160 = arith.constant 6 : index
    %c2_161 = arith.constant 2 : index
    %c18_162 = arith.constant 18 : index
    %212 = vector.load %arg4[%c0_159, %c6_160, %c2_161, %c18_162] : memref<2x8x20x20xf32, #tpu.memory_space<vmem>>, vector<2x1x16x2xf32>
    %213 = vector.shape_cast %212 : vector<2x1x16x2xf32> to vector<2x16x2xf32>
    %214 = vector.shape_cast %211 : vector<2x16x2xf32> to vector<2x1x16x2xf32>
    tpu.vector_store %arg4[%c0_159, %c6_160, %c2_161, %c18_162], %214 {strides = array<i32>} : memref<2x8x20x20xf32, #tpu.memory_space<vmem>>, vector<2x1x16x2xf32>,
    %c0_163 = arith.constant 0 : index
    %c6_164 = arith.constant 6 : index
    %c2_165 = arith.constant 2 : index
    %c2_166 = arith.constant 2 : index
    %215 = vector.load %arg4[%c0_163, %c6_164, %c2_165, %c2_166] : memref<2x8x20x20xf32, #tpu.memory_space<vmem>>, vector<2x1x16x16xf32>
    %216 = vector.shape_cast %215 : vector<2x1x16x16xf32> to vector<2x16x16xf32>
    %217 = vector.shape_cast %198 : vector<2x16x16xf32> to vector<2x1x16x16xf32>
    tpu.vector_store %arg4[%c0_163, %c6_164, %c2_165, %c2_166], %217 {strides = array<i32>} : memref<2x8x20x20xf32, #tpu.memory_space<vmem>>, vector<2x1x16x16xf32>,
    %c7_i32 = arith.constant 7 : i32
    %218 = arith.addi %0, %c7_i32 : i32
    %219 = arith.index_cast %218 : i32 to index
    %220 = memref.load %arg1[%219] : memref<16xf32, #tpu.memory_space<smem>>
    %c7_i32_167 = arith.constant 7 : i32
    %221 = arith.addi %0, %c7_i32_167 : i32
    %222 = arith.index_cast %221 : i32 to index
    %223 = memref.load %arg2[%222] : memref<16xf32, #tpu.memory_space<smem>>
    %c0_168 = arith.constant 0 : index
    %c7 = arith.constant 7 : index
    %c0_169 = arith.constant 0 : index
    %c0_170 = arith.constant 0 : index
    %224 = vector.load %arg3[%c0_168, %c7, %c0_169, %c0_170] : memref<2x8x16x16xf32, #tpu.memory_space<vmem>>, vector<2x1x16x16xf32>
    %225 = vector.shape_cast %224 : vector<2x1x16x16xf32> to vector<2x16x16xf32>
    %226 = vector.broadcast %220 : f32 to vector<2x16x16xf32>
    %227 = arith.mulf %225, %226 : vector<2x16x16xf32>
    %228 = vector.broadcast %223 : f32 to vector<2x16x16xf32>
    %229 = arith.addf %227, %228 : vector<2x16x16xf32>
    %230 = vector.broadcast %223 : f32 to vector<2x2x20xf32>
    %c0_171 = arith.constant 0 : index
    %c7_172 = arith.constant 7 : index
    %c0_173 = arith.constant 0 : index
    %c0_174 = arith.constant 0 : index
    %231 = vector.load %arg4[%c0_171, %c7_172, %c0_173, %c0_174] : memref<2x8x20x20xf32, #tpu.memory_space<vmem>>, vector<2x1x2x20xf32>
    %232 = vector.shape_cast %231 : vector<2x1x2x20xf32> to vector<2x2x20xf32>
    %233 = vector.shape_cast %230 : vector<2x2x20xf32> to vector<2x1x2x20xf32>
    tpu.vector_store %arg4[%c0_171, %c7_172, %c0_173, %c0_174], %233 {strides = array<i32>} : memref<2x8x20x20xf32, #tpu.memory_space<vmem>>, vector<2x1x2x20xf32>,
    %234 = vector.broadcast %223 : f32 to vector<2x2x20xf32>
    %c0_175 = arith.constant 0 : index
    %c7_176 = arith.constant 7 : index
    %c18_177 = arith.constant 18 : index
    %c0_178 = arith.constant 0 : index
    %235 = vector.load %arg4[%c0_175, %c7_176, %c18_177, %c0_178] : memref<2x8x20x20xf32, #tpu.memory_space<vmem>>, vector<2x1x2x20xf32>
    %236 = vector.shape_cast %235 : vector<2x1x2x20xf32> to vector<2x2x20xf32>
    %237 = vector.shape_cast %234 : vector<2x2x20xf32> to vector<2x1x2x20xf32>
    tpu.vector_store %arg4[%c0_175, %c7_176, %c18_177, %c0_178], %237 {strides = array<i32>} : memref<2x8x20x20xf32, #tpu.memory_space<vmem>>, vector<2x1x2x20xf32>,
    %238 = vector.broadcast %223 : f32 to vector<2x16x2xf32>
    %c0_179 = arith.constant 0 : index
    %c7_180 = arith.constant 7 : index
    %c2_181 = arith.constant 2 : index
    %c0_182 = arith.constant 0 : index
    %239 = vector.load %arg4[%c0_179, %c7_180, %c2_181, %c0_182] : memref<2x8x20x20xf32, #tpu.memory_space<vmem>>, vector<2x1x16x2xf32>
    %240 = vector.shape_cast %239 : vector<2x1x16x2xf32> to vector<2x16x2xf32>
    %241 = vector.shape_cast %238 : vector<2x16x2xf32> to vector<2x1x16x2xf32>
    tpu.vector_store %arg4[%c0_179, %c7_180, %c2_181, %c0_182], %241 {strides = array<i32>} : memref<2x8x20x20xf32, #tpu.memory_space<vmem>>, vector<2x1x16x2xf32>,
    %242 = vector.broadcast %223 : f32 to vector<2x16x2xf32>
    %c0_183 = arith.constant 0 : index
    %c7_184 = arith.constant 7 : index
    %c2_185 = arith.constant 2 : index
    %c18_186 = arith.constant 18 : index
    %243 = vector.load %arg4[%c0_183, %c7_184, %c2_185, %c18_186] : memref<2x8x20x20xf32, #tpu.memory_space<vmem>>, vector<2x1x16x2xf32>
    %244 = vector.shape_cast %243 : vector<2x1x16x2xf32> to vector<2x16x2xf32>
    %245 = vector.shape_cast %242 : vector<2x16x2xf32> to vector<2x1x16x2xf32>
    tpu.vector_store %arg4[%c0_183, %c7_184, %c2_185, %c18_186], %245 {strides = array<i32>} : memref<2x8x20x20xf32, #tpu.memory_space<vmem>>, vector<2x1x16x2xf32>,
    %c0_187 = arith.constant 0 : index
    %c7_188 = arith.constant 7 : index
    %c2_189 = arith.constant 2 : index
    %c2_190 = arith.constant 2 : index
    %246 = vector.load %arg4[%c0_187, %c7_188, %c2_189, %c2_190] : memref<2x8x20x20xf32, #tpu.memory_space<vmem>>, vector<2x1x16x16xf32>
    %247 = vector.shape_cast %246 : vector<2x1x16x16xf32> to vector<2x16x16xf32>
    %248 = vector.shape_cast %229 : vector<2x16x16xf32> to vector<2x1x16x16xf32>
    tpu.vector_store %arg4[%c0_187, %c7_188, %c2_189, %c2_190], %248 {strides = array<i32>} : memref<2x8x20x20xf32, #tpu.memory_space<vmem>>, vector<2x1x16x16xf32>,
    return
  }
  func.func @transform_0(%arg0: i32) -> i32 {
    %c0_i32 = arith.constant 0 : i32
    %c0_i32_0 = arith.constant 0 : i32
    return %c0_i32 : i32
  }
  func.func @transform_1(%arg0: i32) -> i32 {
    %c0_i32 = arith.constant 0 : i32
    %c0_i32_0 = arith.constant 0 : i32
    return %c0_i32 : i32
  }
  func.func @transform_2(%arg0: i32) -> (i32, i32, i32, i32) {
    %c0_i32 = arith.constant 0 : i32
    %c0_i32_0 = arith.constant 0 : i32
    %c0_i32_1 = arith.constant 0 : i32
    %c0_i32_2 = arith.constant 0 : i32
    return %c0_i32, %arg0, %c0_i32_0, %c0_i32_1 : i32, i32, i32, i32
  }
  func.func @transform_3(%arg0: i32) -> (i32, i32, i32, i32) {
    %c0_i32 = arith.constant 0 : i32
    %c0_i32_0 = arith.constant 0 : i32
    %c0_i32_1 = arith.constant 0 : i32
    %c0_i32_2 = arith.constant 0 : i32
    return %c0_i32, %arg0, %c0_i32_0, %c0_i32_1 : i32, i32, i32, i32
  }
}

</mosaic_0001>

<llo_original>
// kernel: tpu_custom_call.1
$region0: #{tpu_custom_call.1}
  #allocation0 [shape = 'u32[]', space=smem, size = 0x4, offset = 0x4, fixed_abs, tag = 'smem constant byte address 0x4 - core index']
  #allocation1 [shape = 'u32[144,128]{1,0:T(1,128)}', space=vmem, size = 0x12000, scoped, tag = 'internal scratch']
  #allocation9 [shape = 's32[]', space=sflag, size = 0x4, offset = 0, fixed_abs, tag = 'sflag constant byte address 0x0 - dummy sync flag']
  %s0 = inlined_call_operand.hbm [shape: f32[16], index: 0, kind: input, shape index: {}]
  %s1 = inlined_call_operand.vmem [shape: f32[16], index: 1, kind: input, shape index: {}]
  %s2 = inlined_call_operand.hbm [shape: f32[2,16,16,16], index: 2, kind: input, shape index: {}]
  %s3 = inlined_call_operand.vmem [shape: f32[2,16,20,20], index: 3, kind: output, shape index: {}]
  %s4 = sld [smem:[#allocation0]]
  $region91: #{tpu_custom_call.1} parent=0
    _
  %s6 = ssub.s32 1, %s4
  %s7 = scalar_select 0, %s6, %s4
  $region1: #{tpu_custom_call.1} parent=0
    #allocation2 [shape = 'u8[512]{0}', space=smem, size = 0x200, scoped, tag = 'input window, operand 0, single buffered']
    #allocation3 [shape = 's32[2]{0}', space=sflag, size = 0x8, scoped, tag = 'scoped memory for tpu_custom_call.1']
    #allocation4 [shape = 's32[2]{0}', space=sflag, size = 0x8, scoped, tag = 'scoped memory for tpu_custom_call.1']
    #allocation5 [shape = 's32[2]{0}', space=sflag, size = 0x8, scoped, tag = 'scoped memory for tpu_custom_call.1']
    #allocation6 [shape = 'u8[512]{0}', space=smem, size = 0x200, scoped, tag = 'input window, operand 1, single buffered']
    #allocation7 [shape = 'u8[262144]{0}', space=vmem, size = 0x40000, scoped, tag = 'input window, operand 2']
    #allocation8 [shape = 'u8[393216]{0}', space=vmem, size = 0x60000, scoped, tag = 'output window, operand 0']
    %8 = vsyncpa [#allocation4], 0
    %9 = vsyncpa [#allocation5], 0
    %10 = vsyncpa [#allocation3], 0
    %s11 = scalar_lea.sflag [#allocation3], 1
    %12 = vsyncpa %s11, 0
    loop: start=0, step=1, limit=4
    $region2: #{tpu_custom_call.1} parent=1 // loop_pre_header
      _
    $region3: #{tpu_custom_call.1} parent=1 // loop_header
      %s14 = sphi 0, %s18
      %p15 = scmp.ge.s32.totalorder %s14, 4
      %s22 = sphi 0, %s22
      %s24 = sphi 0, %s22
      %s25 = sphi 0, %s24
      %s39 = sphi 0, %s25
      %s43 = sphi 0, %s43
      %s45 = sphi 0, %s43
      %s46 = sphi 0, %s45
      %s60 = sphi 0, %s46
      %s66 = sphi 0, %s68
      %s69 = sphi 0, %s66
      %s70 = sphi 0, %s69
      %s86 = sphi 0, %s70
      %s92 = sphi 0, %s94
      %s95 = sphi 0, %s92
      %s96 = sphi 0, %s95
      %s112 = sphi 0, %s96
    $region4: #{tpu_custom_call.1} parent=1 // loop_header_branch
      %17 = sbr.rel (%p15) target = $region8
    $region5: #{tpu_custom_call.1} parent=1 // loop_body
      %s19 = ssub.s32 %s14, 1
      %s20 = ssub.s32 %s14, 2
      %s21 = sadd.s32 %s14, 1
      %s23 = sadd.s32 %s22, 1
      %p26 = scmp.eq.s32.totalorder %s14, 1
      %p27 = scmp.ne.s32.totalorder %s22, %s24
      %p28 = scmp.eq.s32.totalorder %s14, 0
      %p29 = por %p27, %p28
      %p30 = scmp.ne.s32.totalorder %s22, %s24
      %p31 = scmp.eq.s32.totalorder %s19, 1
      %p32 = por %p30, %p31
      %p33 = scmp.ne.s32.totalorder %s24, %s25
      %p34 = scmp.eq.s32.totalorder %s19, 0
      %p35 = por %p33, %p34
      %p36 = scmp.ne.s32.totalorder %s24, %s25
      %p37 = scmp.eq.s32.totalorder %s20, 1
      %p38 = por %p36, %p37
      %p40 = scmp.ne.s32.totalorder %s25, %s39
      %p41 = scmp.eq.s32.totalorder %s20, 0
      %p42 = por %p40, %p41
      %s44 = sadd.s32 %s43, 1
      %p47 = scmp.eq.s32.totalorder %s14, 1
      %p48 = scmp.ne.s32.totalorder %s43, %s45
      %p49 = scmp.eq.s32.totalorder %s14, 0
      %p50 = por %p48, %p49
      %p51 = scmp.ne.s32.totalorder %s43, %s45
      %p52 = scmp.eq.s32.totalorder %s19, 1
      %p53 = por %p51, %p52
      %p54 = scmp.ne.s32.totalorder %s45, %s46
      %p55 = scmp.eq.s32.totalorder %s19, 0
      %p56 = por %p54, %p55
      %p57 = scmp.ne.s32.totalorder %s45, %s46
      %p58 = scmp.eq.s32.totalorder %s20, 1
      %p59 = por %p57, %p58
      %p61 = scmp.ne.s32.totalorder %s46, %s60
      %p62 = scmp.eq.s32.totalorder %s20, 0
      %p63 = por %p61, %p62
      %s64 = ssub.s32 %s14, %s21
      %p65 = scmp.eq.s32.totalorder %s64, 0
      %s67 = sadd.s32 %s66, 1
      %s68 = scalar_select %p65, %s66, %s67
      %p71 = pneg %p65
      %p72 = scmp.eq.s32.totalorder %s14, 1
      %p73 = por %p71, %p72
      %p74 = scmp.ne.s32.totalorder %s66, %s69
      %p75 = scmp.eq.s32.totalorder %s14, 0
      %p76 = por %p74, %p75
      %p77 = scmp.ne.s32.totalorder %s66, %s69
      %p78 = scmp.eq.s32.totalorder %s19, 1
      %p79 = por %p77, %p78
      %p80 = scmp.ne.s32.totalorder %s69, %s70
      %p81 = scmp.eq.s32.totalorder %s19, 0
      %p82 = por %p80, %p81
      %p83 = scmp.ne.s32.totalorder %s69, %s70
      %p84 = scmp.eq.s32.totalorder %s20, 1
      %p85 = por %p83, %p84
      %p87 = scmp.ne.s32.totalorder %s70, %s86
      %p88 = scmp.eq.s32.totalorder %s20, 0
      %p89 = por %p87, %p88
      %s90 = ssub.s32 %s14, %s21
      %p91 = scmp.eq.s32.totalorder %s90, 0
      %s93 = sadd.s32 %s92, 1
      %s94 = scalar_select %p91, %s92, %s93
      %p97 = pneg %p91
      %p98 = scmp.eq.s32.totalorder %s14, 1
      %p99 = por %p97, %p98
      %p100 = scmp.ne.s32.totalorder %s92, %s95
      %p101 = scmp.eq.s32.totalorder %s14, 0
      %p102 = por %p100, %p101
      %p103 = scmp.ne.s32.totalorder %s92, %s95
      %p104 = scmp.eq.s32.totalorder %s19, 1
      %p105 = por %p103, %p104
      %p106 = scmp.ne.s32.totalorder %s95, %s96
      %p107 = scmp.eq.s32.totalorder %s19, 0
      %p108 = por %p106, %p107
      %p109 = scmp.ne.s32.totalorder %s95, %s96
      %p110 = scmp.eq.s32.totalorder %s20, 1
      %p111 = por %p109, %p110
      %p113 = scmp.ne.s32.totalorder %s96, %s112
      %p114 = scmp.eq.s32.totalorder %s20, 0
      %p115 = por %p113, %p114
      %p116 = scmp.le.s32.totalorder 1, %s14
      %p117 = scmp.lt.s32.totalorder %s14, 3
      %p118 = pnand %p116, %p117
      %p119 = pneg %p118
      // Predicated region
      $region9: #{tpu_custom_call.1} parent=5 // pred_check
        _
      $region10: #{tpu_custom_call.1} parent=5 // pred_check_branch
        %121 = sbr.rel (%p118) target = $region12
      $region11: #{tpu_custom_call.1} parent=5 // pred_region
        %s122 = ssub.s32 %s14, 1
        // Predicated region
        $region13: #{tpu_custom_call.1} parent=11 // pred_check
          %p123 = pneg %p35
        $region14: #{tpu_custom_call.1} parent=11 // pred_check_branch
          %125 = sbr.rel (%p123) target = $region16
        $region15: #{tpu_custom_call.1} parent=11 // pred_region
          %s127 = ssub.s32 16, 16
          %128 = vsyncadd [#allocation4], %s127
          %131 = dma.hbm_to_smem %s0, 16, [#allocation2], [#allocation4]
        $region16: #{tpu_custom_call.1} parent=11 // pred_fallthru
          _
        // Predicated region
        $region17: #{tpu_custom_call.1} parent=11 // pred_check
          %p132 = pneg %p56
        $region18: #{tpu_custom_call.1} parent=11 // pred_check_branch
          %134 = sbr.rel (%p132) target = $region20
        $region19: #{tpu_custom_call.1} parent=11 // pred_region
          %s136 = ssub.s32 16, 16
          %137 = vsyncadd [#allocation5], %s136
          %s139 = sshll.u32 %s1, 4
          %s140 = int_to_ptr.vmem [resolvable:$true] %s139
          %142 = dma.vmem_to_smem %s140, 16, [#allocation6], [#allocation5]
        $region20: #{tpu_custom_call.1} parent=11 // pred_fallthru
          _
      $region12: #{tpu_custom_call.1} parent=5 // pred_fallthru
        _
      %p143 = scmp.lt.s32.totalorder %s14, 2
      // Predicated region
      $region21: #{tpu_custom_call.1} parent=5 // pred_check
        %p144 = pneg %p143
      $region22: #{tpu_custom_call.1} parent=5 // pred_check_branch
        %146 = sbr.rel (%p144) target = $region24
      $region23: #{tpu_custom_call.1} parent=5 // pred_region
        // Predicated region
        $region25: #{tpu_custom_call.1} parent=23 // pred_check
          %p147 = pneg %p76
        $region26: #{tpu_custom_call.1} parent=23 // pred_check_branch
          %149 = sbr.rel (%p147) target = $region28
        $region27: #{tpu_custom_call.1} parent=23 // pred_region
          #allocation10 [shape = 'u32[6]{0}', space=smem, size = 0x18, scoped, tag = 'DMA stride descriptor']
          %s150 = sand.u32 %s66, 1
          %s151 = scalar_lea.sflag [#allocation3], %s150
          %s152 = sand.u32 %s66, 1
          %s153 = smul.addr %s152, 256
          %s154 = scalar_lea.vmem [#allocation7], %s153
          %s155 = smul.u32 8, %s14
          %s157 = ssub.s32 4096, 4096
          %158 = vsyncadd %s151, %s157
          %s159 = smul.addr %s155, 2
          %s160 = smul.addr %s159, 128
          %s161 = scalar_lea.hbm %s2, %s160
          %s163 = sshll.u32 1, 14
          %s164 = sxor.u32 4294967295, %s163
          %s166 = sld [smem:[#allocation0]]
          %s167 = sadd.s32 2, %s166
          %s169 = sshll.u32 7, 26
          %s170 = sxor.u32 4294967295, %s169
          %s171 = sand.u32 0, %s170
          %s172 = sshll.u32 %s167, 26
          %s173 = sor.u32 %s171, %s172
          %s174 = sshll.u32 %s154, 4
          %s175 = int_to_ptr.vmem [resolvable:$true] %s174
          %181 = sst [smem:[#allocation10]] 4096
          %s182 = scalar_lea.smem [#allocation10], 1
          %183 = sst [smem:[%s182]] 2048
          %s184 = scalar_lea.smem [#allocation10], 2
          %185 = sst [smem:[%s184]] 16
          %s186 = scalar_lea.smem [#allocation10], 3
          %187 = sst [smem:[%s186]] 128
          %s188 = scalar_lea.smem [#allocation10], 4
          %189 = sst [smem:[%s188]] 128
          %s190 = scalar_lea.smem [#allocation10], 5
          %191 = sst [smem:[%s190]] 8
          %193 = dma.general %s161, 4096, %s175, %s151, 131072, [#allocation10], %s173, 0
        $region28: #{tpu_custom_call.1} parent=23 // pred_fallthru
          _
      $region24: #{tpu_custom_call.1} parent=5 // pred_fallthru
        _
      %p194 = scmp.le.s32.totalorder 1, %s14
      %p195 = scmp.lt.s32.totalorder %s14, 3
      %p196 = pnand %p194, %p195
      %p197 = pneg %p196
      // Predicated region
      $region29: #{tpu_custom_call.1} parent=5 // pred_check
        _
      $region30: #{tpu_custom_call.1} parent=5 // pred_check_branch
        %199 = sbr.rel (%p196) target = $region32
      $region31: #{tpu_custom_call.1} parent=5 // pred_region
        %s200 = ssub.s32 %s14, 1
        // Predicated region
        $region33: #{tpu_custom_call.1} parent=31 // pred_check
          %p201 = pneg %p35
        $region34: #{tpu_custom_call.1} parent=31 // pred_check_branch
          %203 = sbr.rel (%p201) target = $region36
        $region35: #{tpu_custom_call.1} parent=31 // pred_region
          %204 = dma.done [#allocation4], 16
        $region36: #{tpu_custom_call.1} parent=31 // pred_fallthru
          _
        // Predicated region
        $region37: #{tpu_custom_call.1} parent=31 // pred_check
          %p205 = pneg %p56
        $region38: #{tpu_custom_call.1} parent=31 // pred_check_branch
          %207 = sbr.rel (%p205) target = $region40
        $region39: #{tpu_custom_call.1} parent=31 // pred_region
          %208 = dma.done [#allocation5], 16
        $region40: #{tpu_custom_call.1} parent=31 // pred_fallthru
          _
        %s209 = sand.u32 %s69, 1
        %s210 = scalar_lea.sflag [#allocation3], %s209
        %s211 = sand.u32 %s69, 1
        %s212 = smul.addr %s211, 256
        %s213 = scalar_lea.vmem [#allocation7], %s212
        // Predicated region
        $region41: #{tpu_custom_call.1} parent=31 // pred_check
          %p214 = pneg %p82
        $region42: #{tpu_custom_call.1} parent=31 // pred_check_branch
          %216 = sbr.rel (%p214) target = $region44
        $region43: #{tpu_custom_call.1} parent=31 // pred_region
          %217 = dma.done %s210, 4096
        $region44: #{tpu_custom_call.1} parent=31 // pred_fallthru
          _
        %218 = sfence
        %p219 = pneg %p35
        %p220 = pneg %p32
        %p221 = pneg %p56
        %p222 = pneg %p53
        %s223 = sand.u32 %s69, 1
        %s224 = scalar_lea.sflag [#allocation3], %s223
        %s225 = sand.u32 %s69, 1
        %s226 = smul.addr %s225, 256
        %s227 = scalar_lea.vmem [#allocation7], %s226
        %p228 = pneg %p82
        %p229 = pneg %p79
        %p230 = pneg %p108
        %p231 = pneg %p105
        %s232 = sand.u32 %s95, 1
        %s233 = sand.u32 %s95, 1
        %s234 = smul.addr %s233, 384
        %s235 = scalar_lea.vmem [#allocation8], %s234
        %s236 = smul.u32 8, %s19
        %s237 = smul.u32 8, %s19
        %s238 = smul.u32 %s19, 8
        %s239 = sld [smem:[#allocation2 + %s238]]
        %s240 = sld [smem:[#allocation6 + %s238]]
        %v241 = vld [vmem:[%s213] sm:$0xff]
        %v242 = vld [vmem:[%s213 + $0x8] sm:$0xff]
        %v243 = vld [vmem:[%s213 + $0x80] sm:$0xff]
        %v244 = vld [vmem:[%s213 + $0x88] sm:$0xff]
        %v245 = vstv %s239
        %v246 = vmul.f32 %v241, %v245
        %v247 = vmul.f32 %v242, %v245
        %v248 = vmul.f32 %v243, %v245
        %v249 = vmul.f32 %v244, %v245
        %v250 = vstv %s240
        %v251 = vadd.f32 %v246, %v250
        %v252 = vadd.f32 %v247, %v250
        %v253 = vadd.f32 %v248, %v250
        %v254 = vadd.f32 %v249, %v250
        %vm255 = vcmask 156672
        %256 = vst.msk [vmem:[%s235] sm:$0x3] %vm255, %v250
        %257 = vst.msk [vmem:[%s235 + $0xc0] sm:$0x3] %vm255, %v250
        %258 = vst.msk [vmem:[%s235 + $0x12] sm:$0x3] %vm255, %v250
        %259 = vst.msk [vmem:[%s235 + $0xd2] sm:$0x3] %vm255, %v250
        %vm260 = vcmask 15360
        %261 = vst.msk [vmem:[%s235 + $0x2] sm:$0xff] %vm260, %v250
        %262 = vst.msk [vmem:[%s235 + $0xa] sm:$0xff] %vm260, %v250
        %263 = vst.msk [vmem:[%s235 + $0xc2] sm:$0xff] %vm260, %v250
        %264 = vst.msk [vmem:[%s235 + $0xca] sm:$0xff] %vm260, %v250
        %vm265 = vcmask 162960
        %266 = vst.msk [vmem:[%s235 + $0x2] sm:$0xff] %vm265, %v250
        %267 = vst.msk [vmem:[%s235 + $0xa] sm:$0xff] %vm265, %v250
        %268 = vst.msk [vmem:[%s235 + $0xc2] sm:$0xff] %vm265, %v250
        %269 = vst.msk [vmem:[%s235 + $0xca] sm:$0xff] %vm265, %v250
        %274 = vrot.lane.b32.xlu0 %v251, 2
        %v275 = vpop.permute.xlu0 %274
        %276 = vrot.lane.b32.xlu0 %v252, 2
        %v277 = vpop.permute.xlu0 %276
        %278 = vrot.lane.b32.xlu0 %v253, 2
        %v279 = vpop.permute.xlu0 %278
        %280 = vrot.lane.b32.xlu0 %v254, 2
        %v281 = vpop.permute.xlu0 %280
        %vm286 = vcmask 146448
        %287 = vst.msk [vmem:[%s235 + $0x2] sm:$0xff] %vm286, %v275
        %288 = vst.msk [vmem:[%s235 + $0xa] sm:$0xff] %vm286, %v277
        %289 = vst.msk [vmem:[%s235 + $0xc2] sm:$0xff] %vm286, %v279
        %290 = vst.msk [vmem:[%s235 + $0xca] sm:$0xff] %vm286, %v281
        %s291 = sadd.s32 %s238, 1
        %s292 = sld [smem:[#allocation2 + %s291]]
        %s293 = sld [smem:[#allocation6 + %s291]]
        %s294 = scalar_lea.vmem %s213, 16 [#allocation7]
        %v295 = vld [vmem:[%s294] sm:$0xff]
        %v296 = vld [vmem:[%s294 + $0x8] sm:$0xff]
        %v297 = vld [vmem:[%s294 + $0x80] sm:$0xff]
        %v298 = vld [vmem:[%s294 + $0x88] sm:$0xff]
        %v299 = vstv %s292
        %v300 = vmul.f32 %v295, %v299
        %v301 = vmul.f32 %v296, %v299
        %v302 = vmul.f32 %v297, %v299
        %v303 = vmul.f32 %v298, %v299
        %v304 = vstv %s293
        %v305 = vadd.f32 %v300, %v304
        %v306 = vadd.f32 %v301, %v304
        %v307 = vadd.f32 %v302, %v304
        %v308 = vadd.f32 %v303, %v304
        %s309 = scalar_lea.vmem %s235, 24 [#allocation8]
        %310 = vst.msk [vmem:[%s309] sm:$0x3] %vm255, %v304
        %311 = vst.msk [vmem:[%s309 + $0xc0] sm:$0x3] %vm255, %v304
        %312 = vst.msk [vmem:[%s309 + $0x12] sm:$0x3] %vm255, %v304
        %313 = vst.msk [vmem:[%s309 + $0xd2] sm:$0x3] %vm255, %v304
        %314 = vst.msk [vmem:[%s309 + $0x2] sm:$0xff] %vm260, %v304
        %315 = vst.msk [vmem:[%s309 + $0xa] sm:$0xff] %vm260, %v304
        %316 = vst.msk [vmem:[%s309 + $0xc2] sm:$0xff] %vm260, %v304
        %317 = vst.msk [vmem:[%s309 + $0xca] sm:$0xff] %vm260, %v304
        %318 = vst.msk [vmem:[%s309 + $0x2] sm:$0xff] %vm265, %v304
        %319 = vst.msk [vmem:[%s309 + $0xa] sm:$0xff] %vm265, %v304
        %320 = vst.msk [vmem:[%s309 + $0xc2] sm:$0xff] %vm265, %v304
        %321 = vst.msk [vmem:[%s309 + $0xca] sm:$0xff] %vm265, %v304
        %326 = vrot.lane.b32.xlu0 %v305, 2
        %v327 = vpop.permute.xlu0 %326
        %328 = vrot.lane.b32.xlu0 %v306, 2
        %v329 = vpop.permute.xlu0 %328
        %330 = vrot.lane.b32.xlu0 %v307, 2
        %v331 = vpop.permute.xlu0 %330
        %332 = vrot.lane.b32.xlu0 %v308, 2
        %v333 = vpop.permute.xlu0 %332
        %338 = vst.msk [vmem:[%s309 + $0x2] sm:$0xff] %vm286, %v327
        %339 = vst.msk [vmem:[%s309 + $0xa] sm:$0xff] %vm286, %v329
        %340 = vst.msk [vmem:[%s309 + $0xc2] sm:$0xff] %vm286, %v331
        %341 = vst.msk [vmem:[%s309 + $0xca] sm:$0xff] %vm286, %v333
        %s342 = sadd.s32 %s238, 2
        %s343 = sld [smem:[#allocation2 + %s342]]
        %s344 = sld [smem:[#allocation6 + %s342]]
        %s345 = scalar_lea.vmem %s213, 32 [#allocation7]
        %v346 = vld [vmem:[%s345] sm:$0xff]
        %v347 = vld [vmem:[%s345 + $0x8] sm:$0xff]
        %v348 = vld [vmem:[%s345 + $0x80] sm:$0xff]
        %v349 = vld [vmem:[%s345 + $0x88] sm:$0xff]
        %v350 = vstv %s343
        %v351 = vmul.f32 %v346, %v350
        %v352 = vmul.f32 %v347, %v350
        %v353 = vmul.f32 %v348, %v350
        %v354 = vmul.f32 %v349, %v350
        %v355 = vstv %s344
        %v356 = vadd.f32 %v351, %v355
        %v357 = vadd.f32 %v352, %v355
        %v358 = vadd.f32 %v353, %v355
        %v359 = vadd.f32 %v354, %v355
        %s360 = scalar_lea.vmem %s235, 48 [#allocation8]
        %361 = vst.msk [vmem:[%s360] sm:$0x3] %vm255, %v355
        %362 = vst.msk [vmem:[%s360 + $0xc0] sm:$0x3] %vm255, %v355
        %363 = vst.msk [vmem:[%s360 + $0x12] sm:$0x3] %vm255, %v355
        %364 = vst.msk [vmem:[%s360 + $0xd2] sm:$0x3] %vm255, %v355
        %365 = vst.msk [vmem:[%s360 + $0x2] sm:$0xff] %vm260, %v355
        %366 = vst.msk [vmem:[%s360 + $0xa] sm:$0xff] %vm260, %v355
        %367 = vst.msk [vmem:[%s360 + $0xc2] sm:$0xff] %vm260, %v355
        %368 = vst.msk [vmem:[%s360 + $0xca] sm:$0xff] %vm260, %v355
        %369 = vst.msk [vmem:[%s360 + $0x2] sm:$0xff] %vm265, %v355
        %370 = vst.msk [vmem:[%s360 + $0xa] sm:$0xff] %vm265, %v355
        %371 = vst.msk [vmem:[%s360 + $0xc2] sm:$0xff] %vm265, %v355
        %372 = vst.msk [vmem:[%s360 + $0xca] sm:$0xff] %vm265, %v355
        %377 = vrot.lane.b32.xlu0 %v356, 2
        %v378 = vpop.permute.xlu0 %377
        %379 = vrot.lane.b32.xlu0 %v357, 2
        %v380 = vpop.permute.xlu0 %379
        %381 = vrot.lane.b32.xlu0 %v358, 2
        %v382 = vpop.permute.xlu0 %381
        %383 = vrot.lane.b32.xlu0 %v359, 2
        %v384 = vpop.permute.xlu0 %383
        %389 = vst.msk [vmem:[%s360 + $0x2] sm:$0xff] %vm286, %v378
        %390 = vst.msk [vmem:[%s360 + $0xa] sm:$0xff] %vm286, %v380
        %391 = vst.msk [vmem:[%s360 + $0xc2] sm:$0xff] %vm286, %v382
        %392 = vst.msk [vmem:[%s360 + $0xca] sm:$0xff] %vm286, %v384
        %s393 = sadd.s32 %s238, 3
        %s394 = sld [smem:[#allocation2 + %s393]]
        %s395 = sld [smem:[#allocation6 + %s393]]
        %s396 = scalar_lea.vmem %s213, 48 [#allocation7]
        %v397 = vld [vmem:[%s396] sm:$0xff]
        %v398 = vld [vmem:[%s396 + $0x8] sm:$0xff]
        %v399 = vld [vmem:[%s396 + $0x80] sm:$0xff]
        %v400 = vld [vmem:[%s396 + $0x88] sm:$0xff]
        %v401 = vstv %s394
        %v402 = vmul.f32 %v397, %v401
        %v403 = vmul.f32 %v398, %v401
        %v404 = vmul.f32 %v399, %v401
        %v405 = vmul.f32 %v400, %v401
        %v406 = vstv %s395
        %v407 = vadd.f32 %v402, %v406
        %v408 = vadd.f32 %v403, %v406
        %v409 = vadd.f32 %v404, %v406
        %v410 = vadd.f32 %v405, %v406
        %s411 = scalar_lea.vmem %s235, 72 [#allocation8]
        %412 = vst.msk [vmem:[%s411] sm:$0x3] %vm255, %v406
        %413 = vst.msk [vmem:[%s411 + $0xc0] sm:$0x3] %vm255, %v406
        %414 = vst.msk [vmem:[%s411 + $0x12] sm:$0x3] %vm255, %v406
        %415 = vst.msk [vmem:[%s411 + $0xd2] sm:$0x3] %vm255, %v406
        %416 = vst.msk [vmem:[%s411 + $0x2] sm:$0xff] %vm260, %v406
        %417 = vst.msk [vmem:[%s411 + $0xa] sm:$0xff] %vm260, %v406
        %418 = vst.msk [vmem:[%s411 + $0xc2] sm:$0xff] %vm260, %v406
        %419 = vst.msk [vmem:[%s411 + $0xca] sm:$0xff] %vm260, %v406
        %420 = vst.msk [vmem:[%s411 + $0x2] sm:$0xff] %vm265, %v406
        %421 = vst.msk [vmem:[%s411 + $0xa] sm:$0xff] %vm265, %v406
        %422 = vst.msk [vmem:[%s411 + $0xc2] sm:$0xff] %vm265, %v406
        %423 = vst.msk [vmem:[%s411 + $0xca] sm:$0xff] %vm265, %v406
        %428 = vrot.lane.b32.xlu0 %v407, 2
        %v429 = vpop.permute.xlu0 %428
        %430 = vrot.lane.b32.xlu0 %v408, 2
        %v431 = vpop.permute.xlu0 %430
        %432 = vrot.lane.b32.xlu0 %v409, 2
        %v433 = vpop.permute.xlu0 %432
        %434 = vrot.lane.b32.xlu0 %v410, 2
        %v435 = vpop.permute.xlu0 %434
        %440 = vst.msk [vmem:[%s411 + $0x2] sm:$0xff] %vm286, %v429
        %441 = vst.msk [vmem:[%s411 + $0xa] sm:$0xff] %vm286, %v431
        %442 = vst.msk [vmem:[%s411 + $0xc2] sm:$0xff] %vm286, %v433
        %443 = vst.msk [vmem:[%s411 + $0xca] sm:$0xff] %vm286, %v435
        %s444 = sadd.s32 %s238, 4
        %s445 = sld [smem:[#allocation2 + %s444]]
        %s446 = sld [smem:[#allocation6 + %s444]]
        %s447 = scalar_lea.vmem %s213, 64 [#allocation7]
        %v448 = vld [vmem:[%s447] sm:$0xff]
        %v449 = vld [vmem:[%s447 + $0x8] sm:$0xff]
        %v450 = vld [vmem:[%s447 + $0x80] sm:$0xff]
        %v451 = vld [vmem:[%s447 + $0x88] sm:$0xff]
        %v452 = vstv %s445
        %v453 = vmul.f32 %v448, %v452
        %v454 = vmul.f32 %v449, %v452
        %v455 = vmul.f32 %v450, %v452
        %v456 = vmul.f32 %v451, %v452
        %v457 = vstv %s446
        %v458 = vadd.f32 %v453, %v457
        %v459 = vadd.f32 %v454, %v457
        %v460 = vadd.f32 %v455, %v457
        %v461 = vadd.f32 %v456, %v457
        %s462 = scalar_lea.vmem %s235, 96 [#allocation8]
        %463 = vst.msk [vmem:[%s462] sm:$0x3] %vm255, %v457
        %464 = vst.msk [vmem:[%s462 + $0xc0] sm:$0x3] %vm255, %v457
        %465 = vst.msk [vmem:[%s462 + $0x12] sm:$0x3] %vm255, %v457
        %466 = vst.msk [vmem:[%s462 + $0xd2] sm:$0x3] %vm255, %v457
        %467 = vst.msk [vmem:[%s462 + $0x2] sm:$0xff] %vm260, %v457
        %468 = vst.msk [vmem:[%s462 + $0xa] sm:$0xff] %vm260, %v457
        %469 = vst.msk [vmem:[%s462 + $0xc2] sm:$0xff] %vm260, %v457
        %470 = vst.msk [vmem:[%s462 + $0xca] sm:$0xff] %vm260, %v457
        %471 = vst.msk [vmem:[%s462 + $0x2] sm:$0xff] %vm265, %v457
        %472 = vst.msk [vmem:[%s462 + $0xa] sm:$0xff] %vm265, %v457
        %473 = vst.msk [vmem:[%s462 + $0xc2] sm:$0xff] %vm265, %v457
        %474 = vst.msk [vmem:[%s462 + $0xca] sm:$0xff] %vm265, %v457
        %479 = vrot.lane.b32.xlu0 %v458, 2
        %v480 = vpop.permute.xlu0 %479
        %481 = vrot.lane.b32.xlu0 %v459, 2
        %v482 = vpop.permute.xlu0 %481
        %483 = vrot.lane.b32.xlu0 %v460, 2
        %v484 = vpop.permute.xlu0 %483
        %485 = vrot.lane.b32.xlu0 %v461, 2
        %v486 = vpop.permute.xlu0 %485
        %491 = vst.msk [vmem:[%s462 + $0x2] sm:$0xff] %vm286, %v480
        %492 = vst.msk [vmem:[%s462 + $0xa] sm:$0xff] %vm286, %v482
        %493 = vst.msk [vmem:[%s462 + $0xc2] sm:$0xff] %vm286, %v484
        %494 = vst.msk [vmem:[%s462 + $0xca] sm:$0xff] %vm286, %v486
        %s495 = sadd.s32 %s238, 5
        %s496 = sld [smem:[#allocation2 + %s495]]
        %s497 = sld [smem:[#allocation6 + %s495]]
        %s498 = scalar_lea.vmem %s213, 80 [#allocation7]
        %v499 = vld [vmem:[%s498] sm:$0xff]
        %v500 = vld [vmem:[%s498 + $0x8] sm:$0xff]
        %v501 = vld [vmem:[%s498 + $0x80] sm:$0xff]
        %v502 = vld [vmem:[%s498 + $0x88] sm:$0xff]
        %v503 = vstv %s496
        %v504 = vmul.f32 %v499, %v503
        %v505 = vmul.f32 %v500, %v503
        %v506 = vmul.f32 %v501, %v503
        %v507 = vmul.f32 %v502, %v503
        %v508 = vstv %s497
        %v509 = vadd.f32 %v504, %v508
        %v510 = vadd.f32 %v505, %v508
        %v511 = vadd.f32 %v506, %v508
        %v512 = vadd.f32 %v507, %v508
        %s513 = scalar_lea.vmem %s235, 120 [#allocation8]
        %514 = vst.msk [vmem:[%s513] sm:$0x3] %vm255, %v508
        %515 = vst.msk [vmem:[%s513 + $0xc0] sm:$0x3] %vm255, %v508
        %516 = vst.msk [vmem:[%s513 + $0x12] sm:$0x3] %vm255, %v508
        %517 = vst.msk [vmem:[%s513 + $0xd2] sm:$0x3] %vm255, %v508
        %518 = vst.msk [vmem:[%s513 + $0x2] sm:$0xff] %vm260, %v508
        %519 = vst.msk [vmem:[%s513 + $0xa] sm:$0xff] %vm260, %v508
        %520 = vst.msk [vmem:[%s513 + $0xc2] sm:$0xff] %vm260, %v508
        %521 = vst.msk [vmem:[%s513 + $0xca] sm:$0xff] %vm260, %v508
        %522 = vst.msk [vmem:[%s513 + $0x2] sm:$0xff] %vm265, %v508
        %523 = vst.msk [vmem:[%s513 + $0xa] sm:$0xff] %vm265, %v508
        %524 = vst.msk [vmem:[%s513 + $0xc2] sm:$0xff] %vm265, %v508
        %525 = vst.msk [vmem:[%s513 + $0xca] sm:$0xff] %vm265, %v508
        %530 = vrot.lane.b32.xlu0 %v509, 2
        %v531 = vpop.permute.xlu0 %530
        %532 = vrot.lane.b32.xlu0 %v510, 2
        %v533 = vpop.permute.xlu0 %532
        %534 = vrot.lane.b32.xlu0 %v511, 2
        %v535 = vpop.permute.xlu0 %534
        %536 = vrot.lane.b32.xlu0 %v512, 2
        %v537 = vpop.permute.xlu0 %536
        %542 = vst.msk [vmem:[%s513 + $0x2] sm:$0xff] %vm286, %v531
        %543 = vst.msk [vmem:[%s513 + $0xa] sm:$0xff] %vm286, %v533
        %544 = vst.msk [vmem:[%s513 + $0xc2] sm:$0xff] %vm286, %v535
        %545 = vst.msk [vmem:[%s513 + $0xca] sm:$0xff] %vm286, %v537
        %s546 = sadd.s32 %s238, 6
        %s547 = sld [smem:[#allocation2 + %s546]]
        %s548 = sld [smem:[#allocation6 + %s546]]
        %s549 = scalar_lea.vmem %s213, 96 [#allocation7]
        %v550 = vld [vmem:[%s549] sm:$0xff]
        %v551 = vld [vmem:[%s549 + $0x8] sm:$0xff]
        %v552 = vld [vmem:[%s549 + $0x80] sm:$0xff]
        %v553 = vld [vmem:[%s549 + $0x88] sm:$0xff]
        %v554 = vstv %s547
        %v555 = vmul.f32 %v550, %v554
        %v556 = vmul.f32 %v551, %v554
        %v557 = vmul.f32 %v552, %v554
        %v558 = vmul.f32 %v553, %v554
        %v559 = vstv %s548
        %v560 = vadd.f32 %v555, %v559
        %v561 = vadd.f32 %v556, %v559
        %v562 = vadd.f32 %v557, %v559
        %v563 = vadd.f32 %v558, %v559
        %s564 = scalar_lea.vmem %s235, 144 [#allocation8]
        %565 = vst.msk [vmem:[%s564] sm:$0x3] %vm255, %v559
        %566 = vst.msk [vmem:[%s564 + $0xc0] sm:$0x3] %vm255, %v559
        %567 = vst.msk [vmem:[%s564 + $0x12] sm:$0x3] %vm255, %v559
        %568 = vst.msk [vmem:[%s564 + $0xd2] sm:$0x3] %vm255, %v559
        %569 = vst.msk [vmem:[%s564 + $0x2] sm:$0xff] %vm260, %v559
        %570 = vst.msk [vmem:[%s564 + $0xa] sm:$0xff] %vm260, %v559
        %571 = vst.msk [vmem:[%s564 + $0xc2] sm:$0xff] %vm260, %v559
        %572 = vst.msk [vmem:[%s564 + $0xca] sm:$0xff] %vm260, %v559
        %573 = vst.msk [vmem:[%s564 + $0x2] sm:$0xff] %vm265, %v559
        %574 = vst.msk [vmem:[%s564 + $0xa] sm:$0xff] %vm265, %v559
        %575 = vst.msk [vmem:[%s564 + $0xc2] sm:$0xff] %vm265, %v559
        %576 = vst.msk [vmem:[%s564 + $0xca] sm:$0xff] %vm265, %v559
        %581 = vrot.lane.b32.xlu0 %v560, 2
        %v582 = vpop.permute.xlu0 %581
        %583 = vrot.lane.b32.xlu0 %v561, 2
        %v584 = vpop.permute.xlu0 %583
        %585 = vrot.lane.b32.xlu0 %v562, 2
        %v586 = vpop.permute.xlu0 %585
        %587 = vrot.lane.b32.xlu0 %v563, 2
        %v588 = vpop.permute.xlu0 %587
        %593 = vst.msk [vmem:[%s564 + $0x2] sm:$0xff] %vm286, %v582
        %594 = vst.msk [vmem:[%s564 + $0xa] sm:$0xff] %vm286, %v584
        %595 = vst.msk [vmem:[%s564 + $0xc2] sm:$0xff] %vm286, %v586
        %596 = vst.msk [vmem:[%s564 + $0xca] sm:$0xff] %vm286, %v588
        %s597 = sadd.s32 %s238, 7
        %s598 = sld [smem:[#allocation2 + %s597]]
        %s599 = sld [smem:[#allocation6 + %s597]]
        %s600 = scalar_lea.vmem %s213, 112 [#allocation7]
        %v601 = vld [vmem:[%s600] sm:$0xff]
        %v602 = vld [vmem:[%s600 + $0x8] sm:$0xff]
        %v603 = vld [vmem:[%s600 + $0x80] sm:$0xff]
        %v604 = vld [vmem:[%s600 + $0x88] sm:$0xff]
        %v605 = vstv %s598
        %v606 = vmul.f32 %v601, %v605
        %v607 = vmul.f32 %v602, %v605
        %v608 = vmul.f32 %v603, %v605
        %v609 = vmul.f32 %v604, %v605
        %v610 = vstv %s599
        %v611 = vadd.f32 %v606, %v610
        %v612 = vadd.f32 %v607, %v610
        %v613 = vadd.f32 %v608, %v610
        %v614 = vadd.f32 %v609, %v610
        %s615 = scalar_lea.vmem %s235, 168 [#allocation8]
        %616 = vst.msk [vmem:[%s615] sm:$0x3] %vm255, %v610
        %617 = vst.msk [vmem:[%s615 + $0xc0] sm:$0x3] %vm255, %v610
        %618 = vst.msk [vmem:[%s615 + $0x12] sm:$0x3] %vm255, %v610
        %619 = vst.msk [vmem:[%s615 + $0xd2] sm:$0x3] %vm255, %v610
        %620 = vst.msk [vmem:[%s615 + $0x2] sm:$0xff] %vm260, %v610
        %621 = vst.msk [vmem:[%s615 + $0xa] sm:$0xff] %vm260, %v610
        %622 = vst.msk [vmem:[%s615 + $0xc2] sm:$0xff] %vm260, %v610
        %623 = vst.msk [vmem:[%s615 + $0xca] sm:$0xff] %vm260, %v610
        %624 = vst.msk [vmem:[%s615 + $0x2] sm:$0xff] %vm265, %v610
        %625 = vst.msk [vmem:[%s615 + $0xa] sm:$0xff] %vm265, %v610
        %626 = vst.msk [vmem:[%s615 + $0xc2] sm:$0xff] %vm265, %v610
        %627 = vst.msk [vmem:[%s615 + $0xca] sm:$0xff] %vm265, %v610
        %632 = vrot.lane.b32.xlu0 %v611, 2
        %v633 = vpop.permute.xlu0 %632
        %634 = vrot.lane.b32.xlu0 %v612, 2
        %v635 = vpop.permute.xlu0 %634
        %636 = vrot.lane.b32.xlu0 %v613, 2
        %v637 = vpop.permute.xlu0 %636
        %638 = vrot.lane.b32.xlu0 %v614, 2
        %v639 = vpop.permute.xlu0 %638
        %644 = vst.msk [vmem:[%s615 + $0x2] sm:$0xff] %vm286, %v633
        %645 = vst.msk [vmem:[%s615 + $0xa] sm:$0xff] %vm286, %v635
        %646 = vst.msk [vmem:[%s615 + $0xc2] sm:$0xff] %vm286, %v637
        %647 = vst.msk [vmem:[%s615 + $0xca] sm:$0xff] %vm286, %v639
        %s648 = sand.u32 %s95, 1
        %s649 = sand.u32 %s95, 1
        %s650 = smul.addr %s649, 384
        %s651 = scalar_lea.vmem [#allocation8], %s650
        // Predicated region
        $region45: #{tpu_custom_call.1} parent=31 // pred_check
          %p652 = pneg %p105
        $region46: #{tpu_custom_call.1} parent=31 // pred_check_branch
          %654 = sbr.rel (%p652) target = $region48
        $region47: #{tpu_custom_call.1} parent=31 // pred_region
          %s655 = smul.u32 8, %s19
          %s656 = smul.addr %s655, 3
          %s657 = smul.addr %s656, 8
          %s658 = scalar_lea.vmem %s3, %s657
          // Predicated region
          $region49: #{tpu_custom_call.1} parent=47 // pred_check
            _
          $region50: #{tpu_custom_call.1} parent=47 // pred_check_branch
            %660 = sbr.rel (0) target = $region52
          $region51: #{tpu_custom_call.1} parent=47 // pred_region
            // Predicated region
            $region53: #{tpu_custom_call.1} parent=51 // pred_check
              _
            $region54: #{tpu_custom_call.1} parent=51 // pred_check_branch
              %662 = sbr.rel (0) target = $region56
            $region55: #{tpu_custom_call.1} parent=51 // pred_region
              // Predicated region
              $region68: #{tpu_custom_call.1} parent=55 // pred_check
                _
              $region69: #{tpu_custom_call.1} parent=55 // pred_check_branch
                %772 = sbr.rel (0) target = $region71
              $region70: #{tpu_custom_call.1} parent=55 // pred_region
                loop: start=0, step=1, limit=1
                $region72: #{tpu_custom_call.1} parent=70 // loop_pre_header
                  _
                $region73: #{tpu_custom_call.1} parent=70 // loop_header
                  %s774 = sphi 0, %s778
                  %p775 = scmp.ge.s32.totalorder %s774, 1
                  %s779 = sphi %s651, %s651
                  %s780 = sphi %s658, %s658
                $region74: #{tpu_custom_call.1} parent=70 // loop_header_branch
                  %777 = sbr.rel (%p775) target = $region78
                $region75: #{tpu_custom_call.1} parent=70 // loop_body
                  %v781 = vld [vmem:[%s779] sm:$0xff]
                  %782 = vst [vmem:[%s780] sm:$0xff] %v781
                  %v783 = vld [vmem:[%s779 + $0x8] sm:$0xff]
                  %784 = vst [vmem:[%s780 + $0x8] sm:$0xff] %v783
                  %v785 = vld [vmem:[%s779 + $0x10] sm:$0xff]
                  %786 = vst [vmem:[%s780 + $0x10] sm:$0xff] %v785
                  %v787 = vld [vmem:[%s779 + $0x18] sm:$0xff]
                  %788 = vst [vmem:[%s780 + $0x18] sm:$0xff] %v787
                  %v789 = vld [vmem:[%s779 + $0x20] sm:$0xff]
                  %790 = vst [vmem:[%s780 + $0x20] sm:$0xff] %v789
                  %v791 = vld [vmem:[%s779 + $0x28] sm:$0xff]
                  %792 = vst [vmem:[%s780 + $0x28] sm:$0xff] %v791
                  %v793 = vld [vmem:[%s779 + $0x30] sm:$0xff]
                  %794 = vst [vmem:[%s780 + $0x30] sm:$0xff] %v793
                  %v795 = vld [vmem:[%s779 + $0x38] sm:$0xff]
                  %796 = vst [vmem:[%s780 + $0x38] sm:$0xff] %v795
                  %v797 = vld [vmem:[%s779 + $0x40] sm:$0xff]
                  %798 = vst [vmem:[%s780 + $0x40] sm:$0xff] %v797
                  %v799 = vld [vmem:[%s779 + $0x48] sm:$0xff]
                  %800 = vst [vmem:[%s780 + $0x48] sm:$0xff] %v799
                  %v801 = vld [vmem:[%s779 + $0x50] sm:$0xff]
                  %802 = vst [vmem:[%s780 + $0x50] sm:$0xff] %v801
                  %v803 = vld [vmem:[%s779 + $0x58] sm:$0xff]
                  %804 = vst [vmem:[%s780 + $0x58] sm:$0xff] %v803
                  %v805 = vld [vmem:[%s779 + $0x60] sm:$0xff]
                  %806 = vst [vmem:[%s780 + $0x60] sm:$0xff] %v805
                  %v807 = vld [vmem:[%s779 + $0x68] sm:$0xff]
                  %808 = vst [vmem:[%s780 + $0x68] sm:$0xff] %v807
                  %v809 = vld [vmem:[%s779 + $0x70] sm:$0xff]
                  %810 = vst [vmem:[%s780 + $0x70] sm:$0xff] %v809
                  %v811 = vld [vmem:[%s779 + $0x78] sm:$0xff]
                  %812 = vst [vmem:[%s780 + $0x78] sm:$0xff] %v811
                  %v813 = vld [vmem:[%s779 + $0x80] sm:$0xff]
                  %814 = vst [vmem:[%s780 + $0x80] sm:$0xff] %v813
                  %v815 = vld [vmem:[%s779 + $0x88] sm:$0xff]
                  %816 = vst [vmem:[%s780 + $0x88] sm:$0xff] %v815
                  %v817 = vld [vmem:[%s779 + $0x90] sm:$0xff]
                  %818 = vst [vmem:[%s780 + $0x90] sm:$0xff] %v817
                  %v819 = vld [vmem:[%s779 + $0x98] sm:$0xff]
                  %820 = vst [vmem:[%s780 + $0x98] sm:$0xff] %v819
                  %v821 = vld [vmem:[%s779 + $0xa0] sm:$0xff]
                  %822 = vst [vmem:[%s780 + $0xa0] sm:$0xff] %v821
                  %v823 = vld [vmem:[%s779 + $0xa8] sm:$0xff]
                  %824 = vst [vmem:[%s780 + $0xa8] sm:$0xff] %v823
                  %v825 = vld [vmem:[%s779 + $0xb0] sm:$0xff]
                  %826 = vst [vmem:[%s780 + $0xb0] sm:$0xff] %v825
                  %v827 = vld [vmem:[%s779 + $0xb8] sm:$0xff]
                  %828 = vst [vmem:[%s780 + $0xb8] sm:$0xff] %v827
                  %v829 = vld [vmem:[%s779 + $0xc0] sm:$0xff]
                  %830 = vst [vmem:[%s780 + $0x180] sm:$0xff] %v829
                  %v831 = vld [vmem:[%s779 + $0xc8] sm:$0xff]
                  %832 = vst [vmem:[%s780 + $0x188] sm:$0xff] %v831
                  %v833 = vld [vmem:[%s779 + $0xd0] sm:$0xff]
                  %834 = vst [vmem:[%s780 + $0x190] sm:$0xff] %v833
                  %v835 = vld [vmem:[%s779 + $0xd8] sm:$0xff]
                  %836 = vst [vmem:[%s780 + $0x198] sm:$0xff] %v835
                  %v837 = vld [vmem:[%s779 + $0xe0] sm:$0xff]
                  %838 = vst [vmem:[%s780 + $0x1a0] sm:$0xff] %v837
                  %v839 = vld [vmem:[%s779 + $0xe8] sm:$0xff]
                  %840 = vst [vmem:[%s780 + $0x1a8] sm:$0xff] %v839
                  %v841 = vld [vmem:[%s779 + $0xf0] sm:$0xff]
                  %842 = vst [vmem:[%s780 + $0x1b0] sm:$0xff] %v841
                  %v843 = vld [vmem:[%s779 + $0xf8] sm:$0xff]
                  %844 = vst [vmem:[%s780 + $0x1b8] sm:$0xff] %v843
                  %v845 = vld [vmem:[%s779 + $0x100] sm:$0xff]
                  %846 = vst [vmem:[%s780 + $0x1c0] sm:$0xff] %v845
                  %v847 = vld [vmem:[%s779 + $0x108] sm:$0xff]
                  %848 = vst [vmem:[%s780 + $0x1c8] sm:$0xff] %v847
                  %v849 = vld [vmem:[%s779 + $0x110] sm:$0xff]
                  %850 = vst [vmem:[%s780 + $0x1d0] sm:$0xff] %v849
                  %v851 = vld [vmem:[%s779 + $0x118] sm:$0xff]
                  %852 = vst [vmem:[%s780 + $0x1d8] sm:$0xff] %v851
                  %v853 = vld [vmem:[%s779 + $0x120] sm:$0xff]
                  %854 = vst [vmem:[%s780 + $0x1e0] sm:$0xff] %v853
                  %v855 = vld [vmem:[%s779 + $0x128] sm:$0xff]
                  %856 = vst [vmem:[%s780 + $0x1e8] sm:$0xff] %v855
                  %v857 = vld [vmem:[%s779 + $0x130] sm:$0xff]
                  %858 = vst [vmem:[%s780 + $0x1f0] sm:$0xff] %v857
                  %v859 = vld [vmem:[%s779 + $0x138] sm:$0xff]
                  %860 = vst [vmem:[%s780 + $0x1f8] sm:$0xff] %v859
                  %v861 = vld [vmem:[%s779 + $0x140] sm:$0xff]
                  %862 = vst [vmem:[%s780 + $0x200] sm:$0xff] %v861
                  %v863 = vld [vmem:[%s779 + $0x148] sm:$0xff]
                  %864 = vst [vmem:[%s780 + $0x208] sm:$0xff] %v863
                  %v865 = vld [vmem:[%s779 + $0x150] sm:$0xff]
                  %866 = vst [vmem:[%s780 + $0x210] sm:$0xff] %v865
                  %v867 = vld [vmem:[%s779 + $0x158] sm:$0xff]
                  %868 = vst [vmem:[%s780 + $0x218] sm:$0xff] %v867
                  %v869 = vld [vmem:[%s779 + $0x160] sm:$0xff]
                  %870 = vst [vmem:[%s780 + $0x220] sm:$0xff] %v869
                  %v871 = vld [vmem:[%s779 + $0x168] sm:$0xff]
                  %872 = vst [vmem:[%s780 + $0x228] sm:$0xff] %v871
                  %v873 = vld [vmem:[%s779 + $0x170] sm:$0xff]
                  %874 = vst [vmem:[%s780 + $0x230] sm:$0xff] %v873
                  %v875 = vld [vmem:[%s779 + $0x178] sm:$0xff]
                  %876 = vst [vmem:[%s780 + $0x238] sm:$0xff] %v875
                $region76: #{tpu_custom_call.1} parent=70 // loop_footer
                  %s778 = sadd.s32 1, %s774
                $region77: #{tpu_custom_call.1} parent=70 // loop_footer_branch
                  %773 = sbr.rel target = $region73
                $region78: #{tpu_custom_call.1} parent=70 // loop_exit
                  _
              $region71: #{tpu_custom_call.1} parent=55 // pred_fallthru
                _
              // Predicated region
              $region79: #{tpu_custom_call.1} parent=55 // pred_check
                _
              $region80: #{tpu_custom_call.1} parent=55 // pred_check_branch
                %878 = sbr.rel target = $region82
              $region81: #{tpu_custom_call.1} parent=55 // pred_region
                _
              $region82: #{tpu_custom_call.1} parent=55 // pred_fallthru
                _
            $region56: #{tpu_custom_call.1} parent=51 // pred_fallthru
              _
            // Predicated region
            $region57: #{tpu_custom_call.1} parent=51 // pred_check
              _
            $region58: #{tpu_custom_call.1} parent=51 // pred_check_branch
              %664 = sbr.rel target = $region60
            $region59: #{tpu_custom_call.1} parent=51 // pred_region
              %s666 = ssub.s32 256, 1
              loop: start=0, step=1, limit=1
              $region61: #{tpu_custom_call.1} parent=59 // loop_pre_header
                _
              $region62: #{tpu_custom_call.1} parent=59 // loop_header
                %s668 = sphi 0, %s672
                %p669 = scmp.ge.s32.totalorder %s668, 1
                %s673 = sphi %s651, %s651
                %s674 = sphi %s658, %s658
              $region63: #{tpu_custom_call.1} parent=59 // loop_header_branch
                %671 = sbr.rel (%p669) target = $region67
              $region64: #{tpu_custom_call.1} parent=59 // loop_body
                %v675 = vld [vmem:[%s673] sm:%s666]
                %676 = vst [vmem:[%s674] sm:%s666] %v675
                %v677 = vld [vmem:[%s673 + $0x8] sm:%s666]
                %678 = vst [vmem:[%s674 + $0x8] sm:%s666] %v677
                %v679 = vld [vmem:[%s673 + $0x10] sm:%s666]
                %680 = vst [vmem:[%s674 + $0x10] sm:%s666] %v679
                %v681 = vld [vmem:[%s673 + $0x18] sm:%s666]
                %682 = vst [vmem:[%s674 + $0x18] sm:%s666] %v681
                %v683 = vld [vmem:[%s673 + $0x20] sm:%s666]
                %684 = vst [vmem:[%s674 + $0x20] sm:%s666] %v683
                %v685 = vld [vmem:[%s673 + $0x28] sm:%s666]
                %686 = vst [vmem:[%s674 + $0x28] sm:%s666] %v685
                %v687 = vld [vmem:[%s673 + $0x30] sm:%s666]
                %688 = vst [vmem:[%s674 + $0x30] sm:%s666] %v687
                %v689 = vld [vmem:[%s673 + $0x38] sm:%s666]
                %690 = vst [vmem:[%s674 + $0x38] sm:%s666] %v689
                %v691 = vld [vmem:[%s673 + $0x40] sm:%s666]
                %692 = vst [vmem:[%s674 + $0x40] sm:%s666] %v691
                %v693 = vld [vmem:[%s673 + $0x48] sm:%s666]
                %694 = vst [vmem:[%s674 + $0x48] sm:%s666] %v693
                %v695 = vld [vmem:[%s673 + $0x50] sm:%s666]
                %696 = vst [vmem:[%s674 + $0x50] sm:%s666] %v695
                %v697 = vld [vmem:[%s673 + $0x58] sm:%s666]
                %698 = vst [vmem:[%s674 + $0x58] sm:%s666] %v697
                %v699 = vld [vmem:[%s673 + $0x60] sm:%s666]
                %700 = vst [vmem:[%s674 + $0x60] sm:%s666] %v699
                %v701 = vld [vmem:[%s673 + $0x68] sm:%s666]
                %702 = vst [vmem:[%s674 + $0x68] sm:%s666] %v701
                %v703 = vld [vmem:[%s673 + $0x70] sm:%s666]
                %704 = vst [vmem:[%s674 + $0x70] sm:%s666] %v703
                %v705 = vld [vmem:[%s673 + $0x78] sm:%s666]
                %706 = vst [vmem:[%s674 + $0x78] sm:%s666] %v705
                %v707 = vld [vmem:[%s673 + $0x80] sm:%s666]
                %708 = vst [vmem:[%s674 + $0x80] sm:%s666] %v707
                %v709 = vld [vmem:[%s673 + $0x88] sm:%s666]
                %710 = vst [vmem:[%s674 + $0x88] sm:%s666] %v709
                %v711 = vld [vmem:[%s673 + $0x90] sm:%s666]
                %712 = vst [vmem:[%s674 + $0x90] sm:%s666] %v711
                %v713 = vld [vmem:[%s673 + $0x98] sm:%s666]
                %714 = vst [vmem:[%s674 + $0x98] sm:%s666] %v713
                %v715 = vld [vmem:[%s673 + $0xa0] sm:%s666]
                %716 = vst [vmem:[%s674 + $0xa0] sm:%s666] %v715
                %v717 = vld [vmem:[%s673 + $0xa8] sm:%s666]
                %718 = vst [vmem:[%s674 + $0xa8] sm:%s666] %v717
                %v719 = vld [vmem:[%s673 + $0xb0] sm:%s666]
                %720 = vst [vmem:[%s674 + $0xb0] sm:%s666] %v719
                %v721 = vld [vmem:[%s673 + $0xb8] sm:%s666]
                %722 = vst [vmem:[%s674 + $0xb8] sm:%s666] %v721
                %v723 = vld [vmem:[%s673 + $0xc0] sm:%s666]
                %724 = vst [vmem:[%s674 + $0x180] sm:%s666] %v723
                %v725 = vld [vmem:[%s673 + $0xc8] sm:%s666]
                %726 = vst [vmem:[%s674 + $0x188] sm:%s666] %v725
                %v727 = vld [vmem:[%s673 + $0xd0] sm:%s666]
                %728 = vst [vmem:[%s674 + $0x190] sm:%s666] %v727
                %v729 = vld [vmem:[%s673 + $0xd8] sm:%s666]
                %730 = vst [vmem:[%s674 + $0x198] sm:%s666] %v729
                %v731 = vld [vmem:[%s673 + $0xe0] sm:%s666]
                %732 = vst [vmem:[%s674 + $0x1a0] sm:%s666] %v731
                %v733 = vld [vmem:[%s673 + $0xe8] sm:%s666]
                %734 = vst [vmem:[%s674 + $0x1a8] sm:%s666] %v733
                %v735 = vld [vmem:[%s673 + $0xf0] sm:%s666]
                %736 = vst [vmem:[%s674 + $0x1b0] sm:%s666] %v735
                %v737 = vld [vmem:[%s673 + $0xf8] sm:%s666]
                %738 = vst [vmem:[%s674 + $0x1b8] sm:%s666] %v737
                %v739 = vld [vmem:[%s673 + $0x100] sm:%s666]
                %740 = vst [vmem:[%s674 + $0x1c0] sm:%s666] %v739
                %v741 = vld [vmem:[%s673 + $0x108] sm:%s666]
                %742 = vst [vmem:[%s674 + $0x1c8] sm:%s666] %v741
                %v743 = vld [vmem:[%s673 + $0x110] sm:%s666]
                %744 = vst [vmem:[%s674 + $0x1d0] sm:%s666] %v743
                %v745 = vld [vmem:[%s673 + $0x118] sm:%s666]
                %746 = vst [vmem:[%s674 + $0x1d8] sm:%s666] %v745
                %v747 = vld [vmem:[%s673 + $0x120] sm:%s666]
                %748 = vst [vmem:[%s674 + $0x1e0] sm:%s666] %v747
                %v749 = vld [vmem:[%s673 + $0x128] sm:%s666]
                %750 = vst [vmem:[%s674 + $0x1e8] sm:%s666] %v749
                %v751 = vld [vmem:[%s673 + $0x130] sm:%s666]
                %752 = vst [vmem:[%s674 + $0x1f0] sm:%s666] %v751
                %v753 = vld [vmem:[%s673 + $0x138] sm:%s666]
                %754 = vst [vmem:[%s674 + $0x1f8] sm:%s666] %v753
                %v755 = vld [vmem:[%s673 + $0x140] sm:%s666]
                %756 = vst [vmem:[%s674 + $0x200] sm:%s666] %v755
                %v757 = vld [vmem:[%s673 + $0x148] sm:%s666]
                %758 = vst [vmem:[%s674 + $0x208] sm:%s666] %v757
                %v759 = vld [vmem:[%s673 + $0x150] sm:%s666]
                %760 = vst [vmem:[%s674 + $0x210] sm:%s666] %v759
                %v761 = vld [vmem:[%s673 + $0x158] sm:%s666]
                %762 = vst [vmem:[%s674 + $0x218] sm:%s666] %v761
                %v763 = vld [vmem:[%s673 + $0x160] sm:%s666]
                %764 = vst [vmem:[%s674 + $0x220] sm:%s666] %v763
                %v765 = vld [vmem:[%s673 + $0x168] sm:%s666]
                %766 = vst [vmem:[%s674 + $0x228] sm:%s666] %v765
                %v767 = vld [vmem:[%s673 + $0x170] sm:%s666]
                %768 = vst [vmem:[%s674 + $0x230] sm:%s666] %v767
                %v769 = vld [vmem:[%s673 + $0x178] sm:%s666]
                %770 = vst [vmem:[%s674 + $0x238] sm:%s666] %v769
              $region65: #{tpu_custom_call.1} parent=59 // loop_footer
                %s672 = sadd.s32 1, %s668
              $region66: #{tpu_custom_call.1} parent=59 // loop_footer_branch
                %667 = sbr.rel target = $region62
              $region67: #{tpu_custom_call.1} parent=59 // loop_exit
                _
            $region60: #{tpu_custom_call.1} parent=51 // pred_fallthru
              _
          $region52: #{tpu_custom_call.1} parent=47 // pred_fallthru
            _
          %879 = vnop
        $region48: #{tpu_custom_call.1} parent=31 // pred_fallthru
          _
      $region32: #{tpu_custom_call.1} parent=5 // pred_fallthru
        _
      %p880 = scmp.le.s32.totalorder 2, %s14
      // Predicated region
      $region83: #{tpu_custom_call.1} parent=5 // pred_check
        %p881 = pneg %p880
      $region84: #{tpu_custom_call.1} parent=5 // pred_check_branch
        %883 = sbr.rel (%p881) target = $region86
      $region85: #{tpu_custom_call.1} parent=5 // pred_region
        %s884 = ssub.s32 %s14, 2
        // Predicated region
        $region87: #{tpu_custom_call.1} parent=85 // pred_check
          %p885 = pneg %p111
        $region88: #{tpu_custom_call.1} parent=85 // pred_check_branch
          %887 = sbr.rel (%p885) target = $region90
        $region89: #{tpu_custom_call.1} parent=85 // pred_region
          %s888 = sand.u32 %s96, 1
          %s889 = sand.u32 %s96, 1
          %s890 = smul.addr %s889, 384
          %s891 = scalar_lea.vmem [#allocation8], %s890
        $region90: #{tpu_custom_call.1} parent=85 // pred_fallthru
          _
      $region86: #{tpu_custom_call.1} parent=5 // pred_fallthru
        _
    $region6: #{tpu_custom_call.1} parent=1 // loop_footer
      %s18 = sadd.s32 1, %s14
    $region7: #{tpu_custom_call.1} parent=1 // loop_footer_branch
      %13 = sbr.rel target = $region3
    $region8: #{tpu_custom_call.1} parent=1 // loop_exit
      _
    %892 = vsyncpa [#allocation3], 1
    %s893 = scalar_lea.sflag [#allocation3], 1
    %894 = vsyncpa %s893, 1
    %895 = vsyncpa [#allocation4], 1
    %s896 = scalar_lea.sflag [#allocation4], 1
    %897 = vsyncpa %s896, 1
    %898 = vsyncpa [#allocation5], 1
    %s899 = scalar_lea.sflag [#allocation5], 1
    %900 = vsyncpa %s899, 1

</llo_original>
